<compile_context>
chip_gen: v7x
topology: tpu7x:2x2x1
jax: 0.10.0
libtpu: 0.0.40
codegen_flags: <defaults>
</compile_context>

<pallas_src>
import functools
import math

import numpy as np
import jax
import jax.numpy as jnp
from jax.experimental import pallas as pl
from jax.experimental.pallas import tpu as pltpu

HOP = 200
WIN = 800
N_FFT = 800
N_FREQ = N_FFT // 2 + 1        # 401
N_MELS = 80
SR = 16000
F_MIN, F_MAX = 55.0, 7600.0
PREEMPH = 0.97

N_FFT_PAD = 896                # 7 * 128 : MXU/lane-aligned contraction dim
N_MELS_PAD = 128               # 80 -> 128 (padded mel columns sliced off in wrapper)
TM_MAX = 1024                  # max frame rows per grid step

_LOG10_SCALE = 1.6 / math.log(10.0)   # folded epilogue: 1.6*log10(S) + 2.4


def _round_up(x, m):
    return ((x + m - 1) // m) * m


def _cdiv(a, b):
    return -(-a // b)


# ---------------- deterministic parameter construction (no checkpoints) ----------------

def _hz_to_mel(f):
    return 2595.0 * np.log10(1.0 + np.asarray(f) / 700.0)


def _mel_to_hz(m):
    return 700.0 * (10.0 ** (np.asarray(m) / 2595.0) - 1.0)


def make_mel_filters():
    """torchaudio.functional.melscale_fbanks(401, 55, 7600, 80, 16000, norm='slaney')."""
    all_freqs = np.linspace(0.0, SR / 2.0, N_FREQ)               # (401,)
    m_pts = np.linspace(_hz_to_mel(F_MIN), _hz_to_mel(F_MAX), N_MELS + 2)
    f_pts = _mel_to_hz(m_pts)                                    # (82,)
    f_diff = np.diff(f_pts)                                      # (81,)
    slopes = f_pts[None, :] - all_freqs[:, None]                 # (401, 82)
    down = -slopes[:, :-2] / f_diff[None, :-1]
    up = slopes[:, 2:] / f_diff[None, 1:]
    fb = np.maximum(0.0, np.minimum(down, up))                   # (401, 80)
    enorm = 2.0 / (f_pts[2:N_MELS + 2] - f_pts[:N_MELS])         # slaney norm
    fb = fb * enorm[None, :]
    return fb.astype(np.float32)                                 # (n_freqs, n_mels)


def make_dft_bases():
    """Windowed real-DFT bases (periodic Hann folded in). Returns f32 (800, 401) each."""
    n = np.arange(N_FFT)
    window = 0.5 - 0.5 * np.cos(2.0 * np.pi * n / WIN)           # periodic Hann, win == n_fft
    k = np.arange(N_FREQ)
    ang = 2.0 * np.pi * np.outer(n, k) / N_FFT                   # (800, 401)
    cos_b = (window[:, None] * np.cos(ang)).astype(np.float32)
    sin_b = (-window[:, None] * np.sin(ang)).astype(np.float32)
    return cos_b, sin_b


def build_params():
    """Trim the DFT/mel matrices to mel-supported frequency bins and pack for the MXU.

    Returns (cs_bf16 (896, 2*fpad), mel_bf16 (fpad, 128), fpad).  The kept-bin range is
    derived from the mel fbank itself so it stays consistent if F_MIN/F_MAX/SR change.
    """
    fb = make_mel_filters()                                      # (401, 80)
    keep = np.nonzero(fb.any(axis=1))[0]                         # bins with nonzero weight
    k_lo, k_hi = int(keep[0]), int(keep[-1]) + 1                 # contiguous cover: 3..380
    n_keep = k_hi - k_lo                                         # 377
    fpad = _round_up(n_keep, 128)                                # 384 = 3*128

    cos_b, sin_b = make_dft_bases()                              # (800, 401) each
    cs = np.zeros((N_FFT_PAD, 2 * fpad), np.float32)
    cs[:N_FFT, :n_keep] = cos_b[:, k_lo:k_hi]
    cs[:N_FFT, fpad:fpad + n_keep] = sin_b[:, k_lo:k_hi]

    mel_p = np.zeros((fpad, N_MELS_PAD), np.float32)
    mel_p[:n_keep, :N_MELS] = fb[k_lo:k_hi, :]

    return (jnp.asarray(cs).astype(jnp.bfloat16),
            jnp.asarray(mel_p).astype(jnp.bfloat16),
            fpad)


# ------------------------------------ Pallas kernel ------------------------------------

def spectrogram_kernel(frames_ref, cs_ref, mel_ref, out_ref, *, fpad):
    # Single DFT matmul against the packed cos|sin basis (bf16 in, f32 accumulate).
    y = jnp.dot(frames_ref[...], cs_ref[...], preferred_element_type=jnp.float32)
    re = y[:, :fpad]                                             # 128-lane-aligned slices
    im = y[:, fpad:]
    mag = jnp.sqrt(re * re + im * im)                            # |STFT|  (tm, fpad)
    S = jnp.dot(mag.astype(jnp.bfloat16), mel_ref[...],
                preferred_element_type=jnp.float32)              # (tm, 128)
    S = jnp.maximum(S, 9.9999e-06)                               # torch.clamp(S, 9.9999e-06)
    # 8*((20*log10(S) - 20 + 100)/100) - 4  ==  1.6*log10(S) + 2.4
    out_ref[...] = jnp.clip(_LOG10_SCALE * jnp.log(S) + 2.4, -4.0, 4.0)


def _pick_tiling(n_frames):
    """Balanced frame tiles: <=1024 rows/tile, bf16-aligned tm, even tile count for v7x."""
    n_tiles = _cdiv(n_frames, TM_MAX)
    if n_frames >= 32:                       # enough rows to split usefully
        n_tiles = max(n_tiles, 2)            # give both v7x TensorCores work
        if n_tiles % 2:                      # even count -> balanced 2-TC sharding
            n_tiles += 1
    tm = _round_up(_cdiv(n_frames, n_tiles), 16)    # 16: bf16 sublane-pack multiple
    nf_pad = n_tiles * tm
    return n_tiles, tm, nf_pad


def audio_spectrogram(wav, cs_b, mel_pad, fpad):
    # --- glue: preemphasis per batch row (torchaudio semantics), f32 ---
    pre = jnp.concatenate([wav[:, :1], wav[:, 1:] - PREEMPH * wav[:, :-1]], axis=1)
    sig = pre.reshape(-1)                                        # wav.reshape(1,-1).squeeze(0)
    # --- glue: centered STFT framing (reflect pad n_fft//2), gather-free ---
    sig = jnp.pad(sig, (N_FFT // 2, N_FFT // 2), mode="reflect")
    L = sig.shape[0]
    n_frames = 1 + (L - N_FFT) // HOP
    usable = (L // HOP) * HOP                                    # == (n_frames + 3) * HOP

    n_tiles, tm, nf_pad = _pick_tiling(n_frames)

    # cast to bf16 BEFORE frame assembly (halves wrapper HBM traffic; commutes w/ concat/pad)
    s2 = sig[:usable].reshape(-1, HOP).astype(jnp.bfloat16)      # (n_frames + 3, HOP)
    frames = jnp.concatenate(
        [s2[k:k + n_frames] for k in range(N_FFT // HOP)], axis=1)  # (n_frames, 800) bf16
    frames = jnp.pad(frames, ((0, nf_pad - n_frames), (0, N_FFT_PAD - N_FFT)))

    out = pl.pallas_call(
        functools.partial(spectrogram_kernel, fpad=fpad),
        out_shape=jax.ShapeDtypeStruct((nf_pad, N_MELS_PAD), jnp.float32),
        grid=(n_tiles,),
        in_specs=[
            pl.BlockSpec((tm, N_FFT_PAD), lambda i: (i, 0)),              # frame tiles
            pl.BlockSpec((N_FFT_PAD, 2 * fpad), lambda i: (0, 0)),        # resident cos|sin
            pl.BlockSpec((fpad, N_MELS_PAD), lambda i: (0, 0)),           # resident mel
        ],
        out_specs=pl.BlockSpec((tm, N_MELS_PAD), lambda i: (i, 0)),
        compiler_params=pltpu.CompilerParams(
            dimension_semantics=("parallel",),                    # megacore-shard frame tiles
            vmem_limit_bytes=40 << 20,                            # fits v7x 64 MiB physical
        ),
    )(frames, cs_b, mel_pad)

    return out[:n_frames, :N_MELS]                                # (n_frames, 80) == orig_mel


# ----------------------------- pure-JAX f32 reference ----------------------------------

def reference_spectrogram(wav, cos_b, sin_b, fb):
    pre = jnp.concatenate([wav[:, :1], wav[:, 1:] - PREEMPH * wav[:, :-1]], axis=1)
    sig = pre.reshape(-1)
    sig = jnp.pad(sig, (N_FFT // 2, N_FFT // 2), mode="reflect")
    n_frames = 1 + (sig.shape[0] - N_FFT) // HOP
    idx = jnp.arange(n_frames)[:, None] * HOP + jnp.arange(N_FFT)[None, :]
    frames = sig[idx].astype(jnp.float32)
    re = frames @ cos_b
    im = frames @ sin_b
    mag = jnp.sqrt(re * re + im * im)
    S = mag @ fb
    S = jnp.maximum(S, 9.9999e-06)
    S = 20.0 * (jnp.log(S) / math.log(10.0)) - 20.0
    S = 8.0 * ((S + 100.0) / 100.0) - 4.0
    return jnp.clip(S, -4.0, 4.0)


if __name__ == "__main__":
    key = jax.random.PRNGKey(0)
    B, T = 2, 1600                                               # 2 x 0.1s of 16 kHz audio
    wav = 0.1 * jax.random.normal(key, (B, T), dtype=jnp.float32)

    cs_bf16, mel_bf16, fpad = build_params()

    mel = audio_spectrogram(wav, cs_bf16, mel_bf16, fpad)
    jax.block_until_ready(mel)

    expected_frames = 1 + (B * T) // HOP                         # 17
    assert mel.shape == (expected_frames, N_MELS), mel.shape
    assert mel.dtype == jnp.float32
    assert bool(jnp.all(jnp.isfinite(mel)))
    assert bool(jnp.all(mel >= -4.0)) and bool(jnp.all(mel <= 4.0))

    # one-time bf16-vs-f32 validation against the untrimmed full-bin reference
    # (loose tolerance; log-mel output spans [-4, 4])
    cos_b, sin_b = make_dft_bases()
    fb = make_mel_filters()
    ref = reference_spectrogram(wav, jnp.asarray(cos_b), jnp.asarray(sin_b), jnp.asarray(fb))
    max_err = float(jnp.max(jnp.abs(mel - ref)))
    assert max_err < 0.25, f"bf16 kernel vs f32 reference max abs err {max_err}"

    print("KERNEL_OK")
</pallas_src>

<mosaic_0001>
module attributes {stable_mosaic.version = 11 : i64} {
  func.func @spectrogram_kernel(%arg0: i32, %arg1: memref<32x896xbf16, #tpu.memory_space<vmem>>, %arg2: memref<896x768xbf16, #tpu.memory_space<vmem>>, %arg3: memref<384x128xbf16, #tpu.memory_space<vmem>>, %arg4: memref<32x128xf32, #tpu.memory_space<vmem>>) attributes {dimension_semantics = [#tpu.dimension_semantics<parallel>], iteration_bounds = array<i64: 1>, scalar_prefetch = 0 : i64, scratch_operands = 0 : i64, tpu.core_type = #tpu.core_type<tc>, window_params = [{transform_indices = @transform_0, window_bounds = array<i64: 32, 896>}, {pipeline_mode = #tpu.pipeline_mode<synchronous>, transform_indices = @transform_1, window_bounds = array<i64: 896, 768>}, {pipeline_mode = #tpu.pipeline_mode<synchronous>, transform_indices = @transform_2, window_bounds = array<i64: 384, 128>}, {transform_indices = @transform_3, window_bounds = array<i64: 32, 128>}]} {
    %c0 = arith.constant 0 : index
    %c0_0 = arith.constant 0 : index
    %0 = vector.load %arg1[%c0, %c0_0] : memref<32x896xbf16, #tpu.memory_space<vmem>>, vector<32x896xbf16>
    %c0_1 = arith.constant 0 : index
    %c0_2 = arith.constant 0 : index
    %1 = vector.load %arg2[%c0_1, %c0_2] : memref<896x768xbf16, #tpu.memory_space<vmem>>, vector<896x768xbf16>
    %cst = arith.constant dense<0.000000e+00> : vector<32x768xf32>
    %2 = tpu.matmul %0, %1, %cst {dimension_numbers = #tpu.dot_dimension_numbers<[1], [0], [0], [1], [0, 0, 1, 1], [], []>} : vector<32x896xbf16>, vector<896x768xbf16>, vector<32x768xf32> -> vector<32x768xf32>
    %3 = vector.extract_strided_slice %2 {offsets = [0, 0], sizes = [32, 384], strides = [1, 1]} : vector<32x768xf32> to vector<32x384xf32>
    %4 = vector.extract_strided_slice %2 {offsets = [0, 384], sizes = [32, 384], strides = [1, 1]} : vector<32x768xf32> to vector<32x384xf32>
    %5 = arith.mulf %3, %3 : vector<32x384xf32>
    %6 = arith.mulf %4, %4 : vector<32x384xf32>
    %7 = arith.addf %5, %6 : vector<32x384xf32>
    %8 = math.sqrt %7 : vector<32x384xf32>
    %9 = arith.truncf %8 : vector<32x384xf32> to vector<32x384xbf16>
    %c0_3 = arith.constant 0 : index
    %c0_4 = arith.constant 0 : index
    %10 = vector.load %arg3[%c0_3, %c0_4] : memref<384x128xbf16, #tpu.memory_space<vmem>>, vector<384x128xbf16>
    %cst_5 = arith.constant dense<0.000000e+00> : vector<32x128xf32>
    %11 = tpu.matmul %9, %10, %cst_5 {dimension_numbers = #tpu.dot_dimension_numbers<[1], [0], [0], [1], [0, 0, 1, 1], [], []>} : vector<32x384xbf16>, vector<384x128xbf16>, vector<32x128xf32> -> vector<32x128xf32>
    %cst_6 = arith.constant 9.999900e-06 : f32
    %12 = vector.broadcast %cst_6 : f32 to vector<32x128xf32>
    %13 = arith.maximumf %11, %12 : vector<32x128xf32>
    %14 = math.log %13 : vector<32x128xf32>
    %cst_7 = arith.constant 0.694871187 : f32
    %15 = vector.broadcast %cst_7 : f32 to vector<32x128xf32>
    %16 = arith.mulf %15, %14 : vector<32x128xf32>
    %cst_8 = arith.constant 2.400000e+00 : f32
    %17 = vector.broadcast %cst_8 : f32 to vector<32x128xf32>
    %18 = arith.addf %16, %17 : vector<32x128xf32>
    %cst_9 = arith.constant -4.000000e+00 : f32
    %cst_10 = arith.constant 4.000000e+00 : f32
    %19 = vector.broadcast %cst_9 : f32 to vector<32x128xf32>
    %20 = arith.maximumf %19, %18 : vector<32x128xf32>
    %21 = vector.broadcast %cst_10 : f32 to vector<32x128xf32>
    %22 = arith.minimumf %21, %20 : vector<32x128xf32>
    %c0_11 = arith.constant 0 : index
    %c0_12 = arith.constant 0 : index
    %23 = vector.load %arg4[%c0_11, %c0_12] : memref<32x128xf32, #tpu.memory_space<vmem>>, vector<32x128xf32>
    tpu.vector_store %arg4[%c0_11, %c0_12], %22 {strides = array<i32>} : memref<32x128xf32, #tpu.memory_space<vmem>>, vector<32x128xf32>,
    return
  }
  func.func @transform_0(%arg0: i32) -> (i32, i32) {
    %c0_i32 = arith.constant 0 : i32
    %c0_i32_0 = arith.constant 0 : i32
    return %arg0, %c0_i32 : i32, i32
  }
  func.func @transform_1(%arg0: i32) -> (i32, i32) {
    %c0_i32 = arith.constant 0 : i32
    %c0_i32_0 = arith.constant 0 : i32
    %c0_i32_1 = arith.constant 0 : i32
    return %c0_i32, %c0_i32_0 : i32, i32
  }
  func.func @transform_2(%arg0: i32) -> (i32, i32) {
    %c0_i32 = arith.constant 0 : i32
    %c0_i32_0 = arith.constant 0 : i32
    %c0_i32_1 = arith.constant 0 : i32
    return %c0_i32, %c0_i32_0 : i32, i32
  }
  func.func @transform_3(%arg0: i32) -> (i32, i32) {
    %c0_i32 = arith.constant 0 : i32
    %c0_i32_0 = arith.constant 0 : i32
    return %arg0, %c0_i32 : i32, i32
  }
}

</mosaic_0001>

<llo_original>
// kernel: tpu_custom_call.1
$region0: #{tpu_custom_call.1}
  #allocation0 [shape = 'u32[]', space=smem, size = 0x4, offset = 0x4, fixed_abs, tag = 'smem constant byte address 0x4 - core index']
  #allocation1 [shape = 'u32[144,128]{1,0:T(1,128)}', space=vmem, size = 0x12000, scoped, tag = 'internal scratch']
  %s0 = inlined_call_operand.hbm [shape: bf16[32,896], index: 0, kind: input, shape index: {}]
  %s1 = inlined_call_operand.hbm [shape: bf16[896,768], index: 1, kind: input, shape index: {}]
  %s2 = inlined_call_operand.hbm [shape: bf16[384,128], index: 2, kind: input, shape index: {}]
  %s3 = inlined_call_operand.hbm [shape: f32[32,128], index: 3, kind: output, shape index: {}]
  %s4 = sld [smem:[#allocation0]]
  $region34: #{tpu_custom_call.1} parent=0
    _
  %s6 = ssub.s32 1, %s4
  %s7 = scalar_select 0, %s6, %s4
  $region1: #{tpu_custom_call.1} parent=0
    #allocation2 [shape = 'u8[57344]{0}', space=vmem, size = 0xe000, scoped, tag = 'input window, operand 0, single buffered']
    #allocation3 [shape = 's32[1]{0}', space=sflag, size = 0x4, scoped, tag = 'scoped memory for tpu_custom_call.1']
    #allocation4 [shape = 's32[1]{0}', space=sflag, size = 0x4, scoped, tag = 'scoped memory for tpu_custom_call.1']
    #allocation5 [shape = 'u8[1376256]{0}', space=vmem, size = 0x150000, scoped, tag = 'input window, operand 1, single buffered']
    #allocation6 [shape = 's32[1]{0}', space=sflag, size = 0x4, scoped, tag = 'scoped memory for tpu_custom_call.1']
    #allocation7 [shape = 'u8[98304]{0}', space=vmem, size = 0x18000, scoped, tag = 'input window, operand 2, single buffered']
    #allocation8 [shape = 'u8[16384]{0}', space=vmem, size = 0x4000, scoped, tag = 'output window, operand 0, single buffered']
    %8 = vsyncpa [#allocation3], 0
    %9 = vsyncpa [#allocation6], 0
    %10 = vsyncpa [#allocation4], 0
    // Predicated region
    $region2: #{tpu_custom_call.1} parent=1 // pred_check
      _
    $region3: #{tpu_custom_call.1} parent=1 // pred_check_branch
      %12 = sbr.rel (0) target = $region5
    $region4: #{tpu_custom_call.1} parent=1 // pred_region
      %s14 = ssub.s32 1792, 1792
      %15 = vsyncadd [#allocation3], %s14
      %s16 = sshll.u32 [#allocation2], 4
      %s17 = int_to_ptr.vmem [resolvable:$true] %s16
      %22 = dma.hbm_to_vmem [thread:$0]  %s0, 1792, %s17, [#allocation3], 448, 448, 28
    $region5: #{tpu_custom_call.1} parent=1 // pred_fallthru
      _
    // Predicated region
    $region6: #{tpu_custom_call.1} parent=1 // pred_check
      _
    $region7: #{tpu_custom_call.1} parent=1 // pred_check_branch
      %24 = sbr.rel (0) target = $region9
    $region8: #{tpu_custom_call.1} parent=1 // pred_region
      %s26 = ssub.s32 43008, 43008
      %27 = vsyncadd [#allocation6], %s26
      %s28 = sshll.u32 [#allocation5], 4
      %s29 = int_to_ptr.vmem [resolvable:$true] %s28
      %34 = dma.hbm_to_vmem [thread:$0]  %s1, 43008, %s29, [#allocation6], 384, 384, 24
    $region9: #{tpu_custom_call.1} parent=1 // pred_fallthru
      _
    // Predicated region
    $region10: #{tpu_custom_call.1} parent=1 // pred_check
      _
    $region11: #{tpu_custom_call.1} parent=1 // pred_check_branch
      %36 = sbr.rel (0) target = $region13
    $region12: #{tpu_custom_call.1} parent=1 // pred_region
      %s38 = ssub.s32 3072, 3072
      %39 = vsyncadd [#allocation6], %s38
      %s40 = sshll.u32 [#allocation7], 4
      %s41 = int_to_ptr.vmem [resolvable:$true] %s40
      %46 = dma.hbm_to_vmem [thread:$0]  %s2, 3072, %s41, [#allocation6], 64, 64, 4
    $region13: #{tpu_custom_call.1} parent=1 // pred_fallthru
      _
    // Predicated region
    $region14: #{tpu_custom_call.1} parent=1 // pred_check
      _
    $region15: #{tpu_custom_call.1} parent=1 // pred_check_branch
      %48 = sbr.rel (0) target = $region17
    $region16: #{tpu_custom_call.1} parent=1 // pred_region
      %49 = dma.done [#allocation3], 1792
    $region17: #{tpu_custom_call.1} parent=1 // pred_fallthru
      _
    // Predicated region
    $region18: #{tpu_custom_call.1} parent=1 // pred_check
      _
    $region19: #{tpu_custom_call.1} parent=1 // pred_check_branch
      %51 = sbr.rel (0) target = $region21
    $region20: #{tpu_custom_call.1} parent=1 // pred_region
      %52 = dma.done [#allocation6], 43008
    $region21: #{tpu_custom_call.1} parent=1 // pred_fallthru
      _
    // Predicated region
    $region22: #{tpu_custom_call.1} parent=1 // pred_check
      _
    $region23: #{tpu_custom_call.1} parent=1 // pred_check_branch
      %54 = sbr.rel (0) target = $region25
    $region24: #{tpu_custom_call.1} parent=1 // pred_region
      %55 = dma.done [#allocation6], 3072
    $region25: #{tpu_custom_call.1} parent=1 // pred_fallthru
      _
    %v57 = vld [vmem:[#allocation2] sm:$0xff]
    %v58 = vld [vmem:[#allocation2 + $0x8] sm:$0xff]
    %v59 = vld [vmem:[#allocation2 + $0x10] sm:$0xff]
    %v60 = vld [vmem:[#allocation2 + $0x18] sm:$0xf]
    %v61 = vld [vmem:[#allocation2 + $0x1c] sm:$0xff]
    %v62 = vld [vmem:[#allocation2 + $0x24] sm:$0xff]
    %v63 = vld [vmem:[#allocation2 + $0x2c] sm:$0xff]
    %v64 = vld [vmem:[#allocation2 + $0x34] sm:$0xf]
    %v65 = vld [vmem:[#allocation2 + $0x38] sm:$0xff]
    %v66 = vld [vmem:[#allocation2 + $0x40] sm:$0xff]
    %v67 = vld [vmem:[#allocation2 + $0x48] sm:$0xff]
    %v68 = vld [vmem:[#allocation2 + $0x50] sm:$0xf]
    %v69 = vld [vmem:[#allocation2 + $0x54] sm:$0xff]
    %v70 = vld [vmem:[#allocation2 + $0x5c] sm:$0xff]
    %v71 = vld [vmem:[#allocation2 + $0x64] sm:$0xff]
    %v72 = vld [vmem:[#allocation2 + $0x6c] sm:$0xf]
    %v73 = vld [vmem:[#allocation5] sm:$0xff]
    %v74 = vld [vmem:[#allocation5 + $0x8] sm:$0xff]
    %v75 = vld [vmem:[#allocation5 + $0x10] sm:$0xff]
    %v76 = vld [vmem:[#allocation5 + $0x18] sm:$0xff]
    %v77 = vld [vmem:[#allocation5 + $0x20] sm:$0xff]
    %v78 = vld [vmem:[#allocation5 + $0x28] sm:$0xff]
    %v79 = vld [vmem:[#allocation5 + $0x30] sm:$0xff]
    %v80 = vld [vmem:[#allocation5 + $0x38] sm:$0xff]
    %v81 = vld [vmem:[#allocation5 + $0x40] sm:$0xff]
    %v82 = vld [vmem:[#allocation5 + $0x48] sm:$0xff]
    %v83 = vld [vmem:[#allocation5 + $0x50] sm:$0xff]
    %v84 = vld [vmem:[#allocation5 + $0x58] sm:$0xff]
    %v85 = vld [vmem:[#allocation5 + $0x60] sm:$0xff]
    %v86 = vld [vmem:[#allocation5 + $0x68] sm:$0xff]
    %v87 = vld [vmem:[#allocation5 + $0x70] sm:$0xff]
    %v88 = vld [vmem:[#allocation5 + $0x78] sm:$0xff]
    %v89 = vld [vmem:[#allocation5 + $0x80] sm:$0xff]
    %v90 = vld [vmem:[#allocation5 + $0x88] sm:$0xff]
    %v91 = vld [vmem:[#allocation5 + $0x90] sm:$0xff]
    %v92 = vld [vmem:[#allocation5 + $0x98] sm:$0xff]
    %v93 = vld [vmem:[#allocation5 + $0xa0] sm:$0xff]
    %v94 = vld [vmem:[#allocation5 + $0xa8] sm:$0xff]
    %v95 = vld [vmem:[#allocation5 + $0xb0] sm:$0xff]
    %v96 = vld [vmem:[#allocation5 + $0xb8] sm:$0xff]
    %v97 = vld [vmem:[#allocation5 + $0xc0] sm:$0xff]
    %v98 = vld [vmem:[#allocation5 + $0xc8] sm:$0xff]
    %v99 = vld [vmem:[#allocation5 + $0xd0] sm:$0xff]
    %v100 = vld [vmem:[#allocation5 + $0xd8] sm:$0xff]
    %v101 = vld [vmem:[#allocation5 + $0xe0] sm:$0xff]
    %v102 = vld [vmem:[#allocation5 + $0xe8] sm:$0xff]
    %v103 = vld [vmem:[#allocation5 + $0xf0] sm:$0xff]
    %v104 = vld [vmem:[#allocation5 + $0xf8] sm:$0xff]
    %v105 = vld [vmem:[#allocation5 + $0x100] sm:$0xff]
    %v106 = vld [vmem:[#allocation5 + $0x108] sm:$0xff]
    %v107 = vld [vmem:[#allocation5 + $0x110] sm:$0xff]
    %v108 = vld [vmem:[#allocation5 + $0x118] sm:$0xff]
    %v109 = vld [vmem:[#allocation5 + $0x120] sm:$0xff]
    %v110 = vld [vmem:[#allocation5 + $0x128] sm:$0xff]
    %v111 = vld [vmem:[#allocation5 + $0x130] sm:$0xff]
    %v112 = vld [vmem:[#allocation5 + $0x138] sm:$0xff]
    %v113 = vld [vmem:[#allocation5 + $0x140] sm:$0xff]
    %v114 = vld [vmem:[#allocation5 + $0x148] sm:$0xff]
    %v115 = vld [vmem:[#allocation5 + $0x150] sm:$0xff]
    %v116 = vld [vmem:[#allocation5 + $0x158] sm:$0xff]
    %v117 = vld [vmem:[#allocation5 + $0x160] sm:$0xff]
    %v118 = vld [vmem:[#allocation5 + $0x168] sm:$0xff]
    %v119 = vld [vmem:[#allocation5 + $0x170] sm:$0xff]
    %v120 = vld [vmem:[#allocation5 + $0x178] sm:$0xff]
    %v121 = vld [vmem:[#allocation5 + $0x180] sm:$0xff]
    %v122 = vld [vmem:[#allocation5 + $0x188] sm:$0xff]
    %v123 = vld [vmem:[#allocation5 + $0x190] sm:$0xff]
    %v124 = vld [vmem:[#allocation5 + $0x198] sm:$0xff]
    %v125 = vld [vmem:[#allocation5 + $0x1a0] sm:$0xff]
    %v126 = vld [vmem:[#allocation5 + $0x1a8] sm:$0xff]
    %v127 = vld [vmem:[#allocation5 + $0x1b0] sm:$0xff]
    %v128 = vld [vmem:[#allocation5 + $0x1b8] sm:$0xff]
    %v129 = vld [vmem:[#allocation5 + $0x1c0] sm:$0xff]
    %v130 = vld [vmem:[#allocation5 + $0x1c8] sm:$0xff]
    %v131 = vld [vmem:[#allocation5 + $0x1d0] sm:$0xff]
    %v132 = vld [vmem:[#allocation5 + $0x1d8] sm:$0xff]
    %v133 = vld [vmem:[#allocation5 + $0x1e0] sm:$0xff]
    %v134 = vld [vmem:[#allocation5 + $0x1e8] sm:$0xff]
    %v135 = vld [vmem:[#allocation5 + $0x1f0] sm:$0xff]
    %v136 = vld [vmem:[#allocation5 + $0x1f8] sm:$0xff]
    %v137 = vld [vmem:[#allocation5 + $0x200] sm:$0xff]
    %v138 = vld [vmem:[#allocation5 + $0x208] sm:$0xff]
    %v139 = vld [vmem:[#allocation5 + $0x210] sm:$0xff]
    %v140 = vld [vmem:[#allocation5 + $0x218] sm:$0xff]
    %v141 = vld [vmem:[#allocation5 + $0x220] sm:$0xff]
    %v142 = vld [vmem:[#allocation5 + $0x228] sm:$0xff]
    %v143 = vld [vmem:[#allocation5 + $0x230] sm:$0xff]
    %v144 = vld [vmem:[#allocation5 + $0x238] sm:$0xff]
    %v145 = vld [vmem:[#allocation5 + $0x240] sm:$0xff]
    %v146 = vld [vmem:[#allocation5 + $0x248] sm:$0xff]
    %v147 = vld [vmem:[#allocation5 + $0x250] sm:$0xff]
    %v148 = vld [vmem:[#allocation5 + $0x258] sm:$0xff]
    %v149 = vld [vmem:[#allocation5 + $0x260] sm:$0xff]
    %v150 = vld [vmem:[#allocation5 + $0x268] sm:$0xff]
    %v151 = vld [vmem:[#allocation5 + $0x270] sm:$0xff]
    %v152 = vld [vmem:[#allocation5 + $0x278] sm:$0xff]
    %v153 = vld [vmem:[#allocation5 + $0x280] sm:$0xff]
    %v154 = vld [vmem:[#allocation5 + $0x288] sm:$0xff]
    %v155 = vld [vmem:[#allocation5 + $0x290] sm:$0xff]
    %v156 = vld [vmem:[#allocation5 + $0x298] sm:$0xff]
    %v157 = vld [vmem:[#allocation5 + $0x2a0] sm:$0xff]
    %v158 = vld [vmem:[#allocation5 + $0x2a8] sm:$0xff]
    %v159 = vld [vmem:[#allocation5 + $0x2b0] sm:$0xff]
    %v160 = vld [vmem:[#allocation5 + $0x2b8] sm:$0xff]
    %v161 = vld [vmem:[#allocation5 + $0x2c0] sm:$0xff]
    %v162 = vld [vmem:[#allocation5 + $0x2c8] sm:$0xff]
    %v163 = vld [vmem:[#allocation5 + $0x2d0] sm:$0xff]
    %v164 = vld [vmem:[#allocation5 + $0x2d8] sm:$0xff]
    %v165 = vld [vmem:[#allocation5 + $0x2e0] sm:$0xff]
    %v166 = vld [vmem:[#allocation5 + $0x2e8] sm:$0xff]
    %v167 = vld [vmem:[#allocation5 + $0x2f0] sm:$0xff]
    %v168 = vld [vmem:[#allocation5 + $0x2f8] sm:$0xff]
    %v169 = vld [vmem:[#allocation5 + $0x300] sm:$0xff]
    %v170 = vld [vmem:[#allocation5 + $0x308] sm:$0xff]
    %v171 = vld [vmem:[#allocation5 + $0x310] sm:$0xff]
    %v172 = vld [vmem:[#allocation5 + $0x318] sm:$0xff]
    %v173 = vld [vmem:[#allocation5 + $0x320] sm:$0xff]
    %v174 = vld [vmem:[#allocation5 + $0x328] sm:$0xff]
    %v175 = vld [vmem:[#allocation5 + $0x330] sm:$0xff]
    %v176 = vld [vmem:[#allocation5 + $0x338] sm:$0xff]
    %v177 = vld [vmem:[#allocation5 + $0x340] sm:$0xff]
    %v178 = vld [vmem:[#allocation5 + $0x348] sm:$0xff]
    %v179 = vld [vmem:[#allocation5 + $0x350] sm:$0xff]
    %v180 = vld [vmem:[#allocation5 + $0x358] sm:$0xff]
    %v181 = vld [vmem:[#allocation5 + $0x360] sm:$0xff]
    %v182 = vld [vmem:[#allocation5 + $0x368] sm:$0xff]
    %v183 = vld [vmem:[#allocation5 + $0x370] sm:$0xff]
    %v184 = vld [vmem:[#allocation5 + $0x378] sm:$0xff]
    %v185 = vld [vmem:[#allocation5 + $0x380] sm:$0xff]
    %v186 = vld [vmem:[#allocation5 + $0x388] sm:$0xff]
    %v187 = vld [vmem:[#allocation5 + $0x390] sm:$0xff]
    %v188 = vld [vmem:[#allocation5 + $0x398] sm:$0xff]
    %v189 = vld [vmem:[#allocation5 + $0x3a0] sm:$0xff]
    %v190 = vld [vmem:[#allocation5 + $0x3a8] sm:$0xff]
    %v191 = vld [vmem:[#allocation5 + $0x3b0] sm:$0xff]
    %v192 = vld [vmem:[#allocation5 + $0x3b8] sm:$0xff]
    %v193 = vld [vmem:[#allocation5 + $0x3c0] sm:$0xff]
    %v194 = vld [vmem:[#allocation5 + $0x3c8] sm:$0xff]
    %v195 = vld [vmem:[#allocation5 + $0x3d0] sm:$0xff]
    %v196 = vld [vmem:[#allocation5 + $0x3d8] sm:$0xff]
    %v197 = vld [vmem:[#allocation5 + $0x3e0] sm:$0xff]
    %v198 = vld [vmem:[#allocation5 + $0x3e8] sm:$0xff]
    %v199 = vld [vmem:[#allocation5 + $0x3f0] sm:$0xff]
    %v200 = vld [vmem:[#allocation5 + $0x3f8] sm:$0xff]
    %v201 = vld [vmem:[#allocation5 + $0x400] sm:$0xff]
    %v202 = vld [vmem:[#allocation5 + $0x408] sm:$0xff]
    %v203 = vld [vmem:[#allocation5 + $0x410] sm:$0xff]
    %v204 = vld [vmem:[#allocation5 + $0x418] sm:$0xff]
    %v205 = vld [vmem:[#allocation5 + $0x420] sm:$0xff]
    %v206 = vld [vmem:[#allocation5 + $0x428] sm:$0xff]
    %v207 = vld [vmem:[#allocation5 + $0x430] sm:$0xff]
    %v208 = vld [vmem:[#allocation5 + $0x438] sm:$0xff]
    %v209 = vld [vmem:[#allocation5 + $0x440] sm:$0xff]
    %v210 = vld [vmem:[#allocation5 + $0x448] sm:$0xff]
    %v211 = vld [vmem:[#allocation5 + $0x450] sm:$0xff]
    %v212 = vld [vmem:[#allocation5 + $0x458] sm:$0xff]
    %v213 = vld [vmem:[#allocation5 + $0x460] sm:$0xff]
    %v214 = vld [vmem:[#allocation5 + $0x468] sm:$0xff]
    %v215 = vld [vmem:[#allocation5 + $0x470] sm:$0xff]
    %v216 = vld [vmem:[#allocation5 + $0x478] sm:$0xff]
    %v217 = vld [vmem:[#allocation5 + $0x480] sm:$0xff]
    %v218 = vld [vmem:[#allocation5 + $0x488] sm:$0xff]
    %v219 = vld [vmem:[#allocation5 + $0x490] sm:$0xff]
    %v220 = vld [vmem:[#allocation5 + $0x498] sm:$0xff]
    %v221 = vld [vmem:[#allocation5 + $0x4a0] sm:$0xff]
    %v222 = vld [vmem:[#allocation5 + $0x4a8] sm:$0xff]
    %v223 = vld [vmem:[#allocation5 + $0x4b0] sm:$0xff]
    %v224 = vld [vmem:[#allocation5 + $0x4b8] sm:$0xff]
    %v225 = vld [vmem:[#allocation5 + $0x4c0] sm:$0xff]
    %v226 = vld [vmem:[#allocation5 + $0x4c8] sm:$0xff]
    %v227 = vld [vmem:[#allocation5 + $0x4d0] sm:$0xff]
    %v228 = vld [vmem:[#allocation5 + $0x4d8] sm:$0xff]
    %v229 = vld [vmem:[#allocation5 + $0x4e0] sm:$0xff]
    %v230 = vld [vmem:[#allocation5 + $0x4e8] sm:$0xff]
    %v231 = vld [vmem:[#allocation5 + $0x4f0] sm:$0xff]
    %v232 = vld [vmem:[#allocation5 + $0x4f8] sm:$0xff]
    %v233 = vld [vmem:[#allocation5 + $0x500] sm:$0xff]
    %v234 = vld [vmem:[#allocation5 + $0x508] sm:$0xff]
    %v235 = vld [vmem:[#allocation5 + $0x510] sm:$0xff]
    %v236 = vld [vmem:[#allocation5 + $0x518] sm:$0xff]
    %v237 = vld [vmem:[#allocation5 + $0x520] sm:$0xff]
    %v238 = vld [vmem:[#allocation5 + $0x528] sm:$0xff]
    %v239 = vld [vmem:[#allocation5 + $0x530] sm:$0xff]
    %v240 = vld [vmem:[#allocation5 + $0x538] sm:$0xff]
    %v241 = vld [vmem:[#allocation5 + $0x540] sm:$0xff]
    %v242 = vld [vmem:[#allocation5 + $0x548] sm:$0xff]
    %v243 = vld [vmem:[#allocation5 + $0x550] sm:$0xff]
    %v244 = vld [vmem:[#allocation5 + $0x558] sm:$0xff]
    %v245 = vld [vmem:[#allocation5 + $0x560] sm:$0xff]
    %v246 = vld [vmem:[#allocation5 + $0x568] sm:$0xff]
    %v247 = vld [vmem:[#allocation5 + $0x570] sm:$0xff]
    %v248 = vld [vmem:[#allocation5 + $0x578] sm:$0xff]
    %v249 = vld [vmem:[#allocation5 + $0x580] sm:$0xff]
    %v250 = vld [vmem:[#allocation5 + $0x588] sm:$0xff]
    %v251 = vld [vmem:[#allocation5 + $0x590] sm:$0xff]
    %v252 = vld [vmem:[#allocation5 + $0x598] sm:$0xff]
    %v253 = vld [vmem:[#allocation5 + $0x5a0] sm:$0xff]
    %v254 = vld [vmem:[#allocation5 + $0x5a8] sm:$0xff]
    %v255 = vld [vmem:[#allocation5 + $0x5b0] sm:$0xff]
    %v256 = vld [vmem:[#allocation5 + $0x5b8] sm:$0xff]
    %v257 = vld [vmem:[#allocation5 + $0x5c0] sm:$0xff]
    %v258 = vld [vmem:[#allocation5 + $0x5c8] sm:$0xff]
    %v259 = vld [vmem:[#allocation5 + $0x5d0] sm:$0xff]
    %v260 = vld [vmem:[#allocation5 + $0x5d8] sm:$0xff]
    %v261 = vld [vmem:[#allocation5 + $0x5e0] sm:$0xff]
    %v262 = vld [vmem:[#allocation5 + $0x5e8] sm:$0xff]
    %v263 = vld [vmem:[#allocation5 + $0x5f0] sm:$0xff]
    %v264 = vld [vmem:[#allocation5 + $0x5f8] sm:$0xff]
    %v265 = vld [vmem:[#allocation5 + $0x600] sm:$0xff]
    %v266 = vld [vmem:[#allocation5 + $0x608] sm:$0xff]
    %v267 = vld [vmem:[#allocation5 + $0x610] sm:$0xff]
    %v268 = vld [vmem:[#allocation5 + $0x618] sm:$0xff]
    %v269 = vld [vmem:[#allocation5 + $0x620] sm:$0xff]
    %v270 = vld [vmem:[#allocation5 + $0x628] sm:$0xff]
    %v271 = vld [vmem:[#allocation5 + $0x630] sm:$0xff]
    %v272 = vld [vmem:[#allocation5 + $0x638] sm:$0xff]
    %v273 = vld [vmem:[#allocation5 + $0x640] sm:$0xff]
    %v274 = vld [vmem:[#allocation5 + $0x648] sm:$0xff]
    %v275 = vld [vmem:[#allocation5 + $0x650] sm:$0xff]
    %v276 = vld [vmem:[#allocation5 + $0x658] sm:$0xff]
    %v277 = vld [vmem:[#allocation5 + $0x660] sm:$0xff]
    %v278 = vld [vmem:[#allocation5 + $0x668] sm:$0xff]
    %v279 = vld [vmem:[#allocation5 + $0x670] sm:$0xff]
    %v280 = vld [vmem:[#allocation5 + $0x678] sm:$0xff]
    %v281 = vld [vmem:[#allocation5 + $0x680] sm:$0xff]
    %v282 = vld [vmem:[#allocation5 + $0x688] sm:$0xff]
    %v283 = vld [vmem:[#allocation5 + $0x690] sm:$0xff]
    %v284 = vld [vmem:[#allocation5 + $0x698] sm:$0xff]
    %v285 = vld [vmem:[#allocation5 + $0x6a0] sm:$0xff]
    %v286 = vld [vmem:[#allocation5 + $0x6a8] sm:$0xff]
    %v287 = vld [vmem:[#allocation5 + $0x6b0] sm:$0xff]
    %v288 = vld [vmem:[#allocation5 + $0x6b8] sm:$0xff]
    %v289 = vld [vmem:[#allocation5 + $0x6c0] sm:$0xff]
    %v290 = vld [vmem:[#allocation5 + $0x6c8] sm:$0xff]
    %v291 = vld [vmem:[#allocation5 + $0x6d0] sm:$0xff]
    %v292 = vld [vmem:[#allocation5 + $0x6d8] sm:$0xff]
    %v293 = vld [vmem:[#allocation5 + $0x6e0] sm:$0xff]
    %v294 = vld [vmem:[#allocation5 + $0x6e8] sm:$0xff]
    %v295 = vld [vmem:[#allocation5 + $0x6f0] sm:$0xff]
    %v296 = vld [vmem:[#allocation5 + $0x6f8] sm:$0xff]
    %v297 = vld [vmem:[#allocation5 + $0x700] sm:$0xff]
    %v298 = vld [vmem:[#allocation5 + $0x708] sm:$0xff]
    %v299 = vld [vmem:[#allocation5 + $0x710] sm:$0xff]
    %v300 = vld [vmem:[#allocation5 + $0x718] sm:$0xff]
    %v301 = vld [vmem:[#allocation5 + $0x720] sm:$0xff]
    %v302 = vld [vmem:[#allocation5 + $0x728] sm:$0xff]
    %v303 = vld [vmem:[#allocation5 + $0x730] sm:$0xff]
    %v304 = vld [vmem:[#allocation5 + $0x738] sm:$0xff]
    %v305 = vld [vmem:[#allocation5 + $0x740] sm:$0xff]
    %v306 = vld [vmem:[#allocation5 + $0x748] sm:$0xff]
    %v307 = vld [vmem:[#allocation5 + $0x750] sm:$0xff]
    %v308 = vld [vmem:[#allocation5 + $0x758] sm:$0xff]
    %v309 = vld [vmem:[#allocation5 + $0x760] sm:$0xff]
    %v310 = vld [vmem:[#allocation5 + $0x768] sm:$0xff]
    %v311 = vld [vmem:[#allocation5 + $0x770] sm:$0xff]
    %v312 = vld [vmem:[#allocation5 + $0x778] sm:$0xff]
    %v313 = vld [vmem:[#allocation5 + $0x780] sm:$0xff]
    %v314 = vld [vmem:[#allocation5 + $0x788] sm:$0xff]
    %v315 = vld [vmem:[#allocation5 + $0x790] sm:$0xff]
    %v316 = vld [vmem:[#allocation5 + $0x798] sm:$0xff]
    %v317 = vld [vmem:[#allocation5 + $0x7a0] sm:$0xff]
    %v318 = vld [vmem:[#allocation5 + $0x7a8] sm:$0xff]
    %v319 = vld [vmem:[#allocation5 + $0x7b0] sm:$0xff]
    %v320 = vld [vmem:[#allocation5 + $0x7b8] sm:$0xff]
    %v321 = vld [vmem:[#allocation5 + $0x7c0] sm:$0xff]
    %v322 = vld [vmem:[#allocation5 + $0x7c8] sm:$0xff]
    %v323 = vld [vmem:[#allocation5 + $0x7d0] sm:$0xff]
    %v324 = vld [vmem:[#allocation5 + $0x7d8] sm:$0xff]
    %v325 = vld [vmem:[#allocation5 + $0x7e0] sm:$0xff]
    %v326 = vld [vmem:[#allocation5 + $0x7e8] sm:$0xff]
    %v327 = vld [vmem:[#allocation5 + $0x7f0] sm:$0xff]
    %v328 = vld [vmem:[#allocation5 + $0x7f8] sm:$0xff]
    %v329 = vld [vmem:[#allocation5 + $0x800] sm:$0xff]
    %v330 = vld [vmem:[#allocation5 + $0x808] sm:$0xff]
    %v331 = vld [vmem:[#allocation5 + $0x810] sm:$0xff]
    %v332 = vld [vmem:[#allocation5 + $0x818] sm:$0xff]
    %v333 = vld [vmem:[#allocation5 + $0x820] sm:$0xff]
    %v334 = vld [vmem:[#allocation5 + $0x828] sm:$0xff]
    %v335 = vld [vmem:[#allocation5 + $0x830] sm:$0xff]
    %v336 = vld [vmem:[#allocation5 + $0x838] sm:$0xff]
    %v337 = vld [vmem:[#allocation5 + $0x840] sm:$0xff]
    %v338 = vld [vmem:[#allocation5 + $0x848] sm:$0xff]
    %v339 = vld [vmem:[#allocation5 + $0x850] sm:$0xff]
    %v340 = vld [vmem:[#allocation5 + $0x858] sm:$0xff]
    %v341 = vld [vmem:[#allocation5 + $0x860] sm:$0xff]
    %v342 = vld [vmem:[#allocation5 + $0x868] sm:$0xff]
    %v343 = vld [vmem:[#allocation5 + $0x870] sm:$0xff]
    %v344 = vld [vmem:[#allocation5 + $0x878] sm:$0xff]
    %v345 = vld [vmem:[#allocation5 + $0x880] sm:$0xff]
    %v346 = vld [vmem:[#allocation5 + $0x888] sm:$0xff]
    %v347 = vld [vmem:[#allocation5 + $0x890] sm:$0xff]
    %v348 = vld [vmem:[#allocation5 + $0x898] sm:$0xff]
    %v349 = vld [vmem:[#allocation5 + $0x8a0] sm:$0xff]
    %v350 = vld [vmem:[#allocation5 + $0x8a8] sm:$0xff]
    %v351 = vld [vmem:[#allocation5 + $0x8b0] sm:$0xff]
    %v352 = vld [vmem:[#allocation5 + $0x8b8] sm:$0xff]
    %v353 = vld [vmem:[#allocation5 + $0x8c0] sm:$0xff]
    %v354 = vld [vmem:[#allocation5 + $0x8c8] sm:$0xff]
    %v355 = vld [vmem:[#allocation5 + $0x8d0] sm:$0xff]
    %v356 = vld [vmem:[#allocation5 + $0x8d8] sm:$0xff]
    %v357 = vld [vmem:[#allocation5 + $0x8e0] sm:$0xff]
    %v358 = vld [vmem:[#allocation5 + $0x8e8] sm:$0xff]
    %v359 = vld [vmem:[#allocation5 + $0x8f0] sm:$0xff]
    %v360 = vld [vmem:[#allocation5 + $0x8f8] sm:$0xff]
    %v361 = vld [vmem:[#allocation5 + $0x900] sm:$0xff]
    %v362 = vld [vmem:[#allocation5 + $0x908] sm:$0xff]
    %v363 = vld [vmem:[#allocation5 + $0x910] sm:$0xff]
    %v364 = vld [vmem:[#allocation5 + $0x918] sm:$0xff]
    %v365 = vld [vmem:[#allocation5 + $0x920] sm:$0xff]
    %v366 = vld [vmem:[#allocation5 + $0x928] sm:$0xff]
    %v367 = vld [vmem:[#allocation5 + $0x930] sm:$0xff]
    %v368 = vld [vmem:[#allocation5 + $0x938] sm:$0xff]
    %v369 = vld [vmem:[#allocation5 + $0x940] sm:$0xff]
    %v370 = vld [vmem:[#allocation5 + $0x948] sm:$0xff]
    %v371 = vld [vmem:[#allocation5 + $0x950] sm:$0xff]
    %v372 = vld [vmem:[#allocation5 + $0x958] sm:$0xff]
    %v373 = vld [vmem:[#allocation5 + $0x960] sm:$0xff]
    %v374 = vld [vmem:[#allocation5 + $0x968] sm:$0xff]
    %v375 = vld [vmem:[#allocation5 + $0x970] sm:$0xff]
    %v376 = vld [vmem:[#allocation5 + $0x978] sm:$0xff]
    %v377 = vld [vmem:[#allocation5 + $0x980] sm:$0xff]
    %v378 = vld [vmem:[#allocation5 + $0x988] sm:$0xff]
    %v379 = vld [vmem:[#allocation5 + $0x990] sm:$0xff]
    %v380 = vld [vmem:[#allocation5 + $0x998] sm:$0xff]
    %v381 = vld [vmem:[#allocation5 + $0x9a0] sm:$0xff]
    %v382 = vld [vmem:[#allocation5 + $0x9a8] sm:$0xff]
    %v383 = vld [vmem:[#allocation5 + $0x9b0] sm:$0xff]
    %v384 = vld [vmem:[#allocation5 + $0x9b8] sm:$0xff]
    %v385 = vld [vmem:[#allocation5 + $0x9c0] sm:$0xff]
    %v386 = vld [vmem:[#allocation5 + $0x9c8] sm:$0xff]
    %v387 = vld [vmem:[#allocation5 + $0x9d0] sm:$0xff]
    %v388 = vld [vmem:[#allocation5 + $0x9d8] sm:$0xff]
    %v389 = vld [vmem:[#allocation5 + $0x9e0] sm:$0xff]
    %v390 = vld [vmem:[#allocation5 + $0x9e8] sm:$0xff]
    %v391 = vld [vmem:[#allocation5 + $0x9f0] sm:$0xff]
    %v392 = vld [vmem:[#allocation5 + $0x9f8] sm:$0xff]
    %v393 = vld [vmem:[#allocation5 + $0xa00] sm:$0xff]
    %v394 = vld [vmem:[#allocation5 + $0xa08] sm:$0xff]
    %v395 = vld [vmem:[#allocation5 + $0xa10] sm:$0xff]
    %v396 = vld [vmem:[#allocation5 + $0xa18] sm:$0xff]
    %v397 = vld [vmem:[#allocation5 + $0xa20] sm:$0xff]
    %v398 = vld [vmem:[#allocation5 + $0xa28] sm:$0xff]
    %v399 = vld [vmem:[#allocation5 + $0xa30] sm:$0xff]
    %v400 = vld [vmem:[#allocation5 + $0xa38] sm:$0xff]
    %v401 = vld [vmem:[#allocation5 + $0xa40] sm:$0xff]
    %v402 = vld [vmem:[#allocation5 + $0xa48] sm:$0xff]
    %v403 = vld [vmem:[#allocation5 + $0xa50] sm:$0xff]
    %v404 = vld [vmem:[#allocation5 + $0xa58] sm:$0xff]
    %v405 = vld [vmem:[#allocation5 + $0xa60] sm:$0xff]
    %v406 = vld [vmem:[#allocation5 + $0xa68] sm:$0xff]
    %v407 = vld [vmem:[#allocation5 + $0xa70] sm:$0xff]
    %v408 = vld [vmem:[#allocation5 + $0xa78] sm:$0xff]
    %v425 = vunpack.c.l.b16 %v57
    %v426 = vunpack.c.h.b16 %v57
    %v427 = vunpack.c.l.b16 %v58
    %v428 = vunpack.c.h.b16 %v58
    %v429 = vunpack.c.l.b16 %v59
    %v430 = vunpack.c.h.b16 %v59
    %v431 = vunpack.c.l.b16 %v60
    %v432 = vunpack.c.l.b16 %v61
    %v433 = vunpack.c.h.b16 %v61
    %v434 = vunpack.c.l.b16 %v62
    %v435 = vunpack.c.h.b16 %v62
    %v436 = vunpack.c.l.b16 %v63
    %v437 = vunpack.c.h.b16 %v63
    %v438 = vunpack.c.l.b16 %v64
    %v439 = vunpack.c.l.b16 %v65
    %v440 = vunpack.c.h.b16 %v65
    %v441 = vunpack.c.l.b16 %v66
    %v442 = vunpack.c.h.b16 %v66
    %v443 = vunpack.c.l.b16 %v67
    %v444 = vunpack.c.h.b16 %v67
    %v445 = vunpack.c.l.b16 %v68
    %v446 = vunpack.c.l.b16 %v69
    %v447 = vunpack.c.h.b16 %v69
    %v448 = vunpack.c.l.b16 %v70
    %v449 = vunpack.c.h.b16 %v70
    %v450 = vunpack.c.l.b16 %v71
    %v451 = vunpack.c.h.b16 %v71
    %v452 = vunpack.c.l.b16 %v72
    %v453 = vpack.c.b16 %v432, %v425
    %v454 = vpack.c.b16 %v433, %v426
    %v455 = vpack.c.b16 %v434, %v427
    %v456 = vpack.c.b16 %v435, %v428
    %v457 = vpack.c.b16 %v436, %v429
    %v458 = vpack.c.b16 %v437, %v430
    %v459 = vpack.c.b16 %v438, %v431
    %v460 = vpack.c.b16 %v446, %v439
    %v461 = vpack.c.b16 %v447, %v440
    %v462 = vpack.c.b16 %v448, %v441
    %v463 = vpack.c.b16 %v449, %v442
    %v464 = vpack.c.b16 %v450, %v443
    %v465 = vpack.c.b16 %v451, %v444
    %v466 = vpack.c.b16 %v452, %v445
    %v817 = vunpack.c.l.b16 %v73
    %v818 = vunpack.c.h.b16 %v73
    %v819 = vunpack.c.l.b16 %v74
    %v820 = vunpack.c.h.b16 %v74
    %v821 = vunpack.c.l.b16 %v75
    %v822 = vunpack.c.h.b16 %v75
    %v823 = vunpack.c.l.b16 %v76
    %v824 = vunpack.c.h.b16 %v76
    %v825 = vunpack.c.l.b16 %v77
    %v826 = vunpack.c.h.b16 %v77
    %v827 = vunpack.c.l.b16 %v78
    %v828 = vunpack.c.h.b16 %v78
    %v829 = vunpack.c.l.b16 %v79
    %v830 = vunpack.c.h.b16 %v79
    %v831 = vunpack.c.l.b16 %v80
    %v832 = vunpack.c.h.b16 %v80
    %v833 = vunpack.c.l.b16 %v81
    %v834 = vunpack.c.h.b16 %v81
    %v835 = vunpack.c.l.b16 %v82
    %v836 = vunpack.c.h.b16 %v82
    %v837 = vunpack.c.l.b16 %v83
    %v838 = vunpack.c.h.b16 %v83
    %v839 = vunpack.c.l.b16 %v84
    %v840 = vunpack.c.h.b16 %v84
    %v841 = vunpack.c.l.b16 %v85
    %v842 = vunpack.c.h.b16 %v85
    %v843 = vunpack.c.l.b16 %v86
    %v844 = vunpack.c.h.b16 %v86
    %v845 = vunpack.c.l.b16 %v87
    %v846 = vunpack.c.h.b16 %v87
    %v847 = vunpack.c.l.b16 %v88
    %v848 = vunpack.c.h.b16 %v88
    %v849 = vunpack.c.l.b16 %v89
    %v850 = vunpack.c.h.b16 %v89
    %v851 = vunpack.c.l.b16 %v90
    %v852 = vunpack.c.h.b16 %v90
    %v853 = vunpack.c.l.b16 %v91
    %v854 = vunpack.c.h.b16 %v91
    %v855 = vunpack.c.l.b16 %v92
    %v856 = vunpack.c.h.b16 %v92
    %v857 = vunpack.c.l.b16 %v93
    %v858 = vunpack.c.h.b16 %v93
    %v859 = vunpack.c.l.b16 %v94
    %v860 = vunpack.c.h.b16 %v94
    %v861 = vunpack.c.l.b16 %v95
    %v862 = vunpack.c.h.b16 %v95
    %v863 = vunpack.c.l.b16 %v96
    %v864 = vunpack.c.h.b16 %v96
    %v865 = vunpack.c.l.b16 %v97
    %v866 = vunpack.c.h.b16 %v97
    %v867 = vunpack.c.l.b16 %v98
    %v868 = vunpack.c.h.b16 %v98
    %v869 = vunpack.c.l.b16 %v99
    %v870 = vunpack.c.h.b16 %v99
    %v871 = vunpack.c.l.b16 %v100
    %v872 = vunpack.c.h.b16 %v100
    %v873 = vunpack.c.l.b16 %v101
    %v874 = vunpack.c.h.b16 %v101
    %v875 = vunpack.c.l.b16 %v102
    %v876 = vunpack.c.h.b16 %v102
    %v877 = vunpack.c.l.b16 %v103
    %v878 = vunpack.c.h.b16 %v103
    %v879 = vunpack.c.l.b16 %v104
    %v880 = vunpack.c.h.b16 %v104
    %v881 = vunpack.c.l.b16 %v105
    %v882 = vunpack.c.h.b16 %v105
    %v883 = vunpack.c.l.b16 %v106
    %v884 = vunpack.c.h.b16 %v106
    %v885 = vunpack.c.l.b16 %v107
    %v886 = vunpack.c.h.b16 %v107
    %v887 = vunpack.c.l.b16 %v108
    %v888 = vunpack.c.h.b16 %v108
    %v889 = vunpack.c.l.b16 %v109
    %v890 = vunpack.c.h.b16 %v109
    %v891 = vunpack.c.l.b16 %v110
    %v892 = vunpack.c.h.b16 %v110
    %v893 = vunpack.c.l.b16 %v111
    %v894 = vunpack.c.h.b16 %v111
    %v895 = vunpack.c.l.b16 %v112
    %v896 = vunpack.c.h.b16 %v112
    %v897 = vunpack.c.l.b16 %v113
    %v898 = vunpack.c.h.b16 %v113
    %v899 = vunpack.c.l.b16 %v114
    %v900 = vunpack.c.h.b16 %v114
    %v901 = vunpack.c.l.b16 %v115
    %v902 = vunpack.c.h.b16 %v115
    %v903 = vunpack.c.l.b16 %v116
    %v904 = vunpack.c.h.b16 %v116
    %v905 = vunpack.c.l.b16 %v117
    %v906 = vunpack.c.h.b16 %v117
    %v907 = vunpack.c.l.b16 %v118
    %v908 = vunpack.c.h.b16 %v118
    %v909 = vunpack.c.l.b16 %v119
    %v910 = vunpack.c.h.b16 %v119
    %v911 = vunpack.c.l.b16 %v120
    %v912 = vunpack.c.h.b16 %v120
    %v913 = vunpack.c.l.b16 %v121
    %v914 = vunpack.c.h.b16 %v121
    %v915 = vunpack.c.l.b16 %v122
    %v916 = vunpack.c.h.b16 %v122
    %v917 = vunpack.c.l.b16 %v123
    %v918 = vunpack.c.h.b16 %v123
    %v919 = vunpack.c.l.b16 %v124
    %v920 = vunpack.c.h.b16 %v124
    %v921 = vunpack.c.l.b16 %v125
    %v922 = vunpack.c.h.b16 %v125
    %v923 = vunpack.c.l.b16 %v126
    %v924 = vunpack.c.h.b16 %v126
    %v925 = vunpack.c.l.b16 %v127
    %v926 = vunpack.c.h.b16 %v127
    %v927 = vunpack.c.l.b16 %v128
    %v928 = vunpack.c.h.b16 %v128
    %v929 = vunpack.c.l.b16 %v129
    %v930 = vunpack.c.h.b16 %v129
    %v931 = vunpack.c.l.b16 %v130
    %v932 = vunpack.c.h.b16 %v130
    %v933 = vunpack.c.l.b16 %v131
    %v934 = vunpack.c.h.b16 %v131
    %v935 = vunpack.c.l.b16 %v132
    %v936 = vunpack.c.h.b16 %v132
    %v937 = vunpack.c.l.b16 %v133
    %v938 = vunpack.c.h.b16 %v133
    %v939 = vunpack.c.l.b16 %v134
    %v940 = vunpack.c.h.b16 %v134
    %v941 = vunpack.c.l.b16 %v135
    %v942 = vunpack.c.h.b16 %v135
    %v943 = vunpack.c.l.b16 %v136
    %v944 = vunpack.c.h.b16 %v136
    %v945 = vunpack.c.l.b16 %v137
    %v946 = vunpack.c.h.b16 %v137
    %v947 = vunpack.c.l.b16 %v138
    %v948 = vunpack.c.h.b16 %v138
    %v949 = vunpack.c.l.b16 %v139
    %v950 = vunpack.c.h.b16 %v139
    %v951 = vunpack.c.l.b16 %v140
    %v952 = vunpack.c.h.b16 %v140
    %v953 = vunpack.c.l.b16 %v141
    %v954 = vunpack.c.h.b16 %v141
    %v955 = vunpack.c.l.b16 %v142
    %v956 = vunpack.c.h.b16 %v142
    %v957 = vunpack.c.l.b16 %v143
    %v958 = vunpack.c.h.b16 %v143
    %v959 = vunpack.c.l.b16 %v144
    %v960 = vunpack.c.h.b16 %v144
    %v961 = vunpack.c.l.b16 %v145
    %v962 = vunpack.c.h.b16 %v145
    %v963 = vunpack.c.l.b16 %v146
    %v964 = vunpack.c.h.b16 %v146
    %v965 = vunpack.c.l.b16 %v147
    %v966 = vunpack.c.h.b16 %v147
    %v967 = vunpack.c.l.b16 %v148
    %v968 = vunpack.c.h.b16 %v148
    %v969 = vunpack.c.l.b16 %v149
    %v970 = vunpack.c.h.b16 %v149
    %v971 = vunpack.c.l.b16 %v150
    %v972 = vunpack.c.h.b16 %v150
    %v973 = vunpack.c.l.b16 %v151
    %v974 = vunpack.c.h.b16 %v151
    %v975 = vunpack.c.l.b16 %v152
    %v976 = vunpack.c.h.b16 %v152
    %v977 = vunpack.c.l.b16 %v153
    %v978 = vunpack.c.h.b16 %v153
    %v979 = vunpack.c.l.b16 %v154
    %v980 = vunpack.c.h.b16 %v154
    %v981 = vunpack.c.l.b16 %v155
    %v982 = vunpack.c.h.b16 %v155
    %v983 = vunpack.c.l.b16 %v156
    %v984 = vunpack.c.h.b16 %v156
    %v985 = vunpack.c.l.b16 %v157
    %v986 = vunpack.c.h.b16 %v157
    %v987 = vunpack.c.l.b16 %v158
    %v988 = vunpack.c.h.b16 %v158
    %v989 = vunpack.c.l.b16 %v159
    %v990 = vunpack.c.h.b16 %v159
    %v991 = vunpack.c.l.b16 %v160
    %v992 = vunpack.c.h.b16 %v160
    %v993 = vunpack.c.l.b16 %v161
    %v994 = vunpack.c.h.b16 %v161
    %v995 = vunpack.c.l.b16 %v162
    %v996 = vunpack.c.h.b16 %v162
    %v997 = vunpack.c.l.b16 %v163
    %v998 = vunpack.c.h.b16 %v163
    %v999 = vunpack.c.l.b16 %v164
    %v1000 = vunpack.c.h.b16 %v164
    %v1001 = vunpack.c.l.b16 %v165
    %v1002 = vunpack.c.h.b16 %v165
    %v1003 = vunpack.c.l.b16 %v166
    %v1004 = vunpack.c.h.b16 %v166
    %v1005 = vunpack.c.l.b16 %v167
    %v1006 = vunpack.c.h.b16 %v167
    %v1007 = vunpack.c.l.b16 %v168
    %v1008 = vunpack.c.h.b16 %v168
    %v1009 = vunpack.c.l.b16 %v169
    %v1010 = vunpack.c.h.b16 %v169
    %v1011 = vunpack.c.l.b16 %v170
    %v1012 = vunpack.c.h.b16 %v170
    %v1013 = vunpack.c.l.b16 %v171
    %v1014 = vunpack.c.h.b16 %v171
    %v1015 = vunpack.c.l.b16 %v172
    %v1016 = vunpack.c.h.b16 %v172
    %v1017 = vunpack.c.l.b16 %v173
    %v1018 = vunpack.c.h.b16 %v173
    %v1019 = vunpack.c.l.b16 %v174
    %v1020 = vunpack.c.h.b16 %v174
    %v1021 = vunpack.c.l.b16 %v175
    %v1022 = vunpack.c.h.b16 %v175
    %v1023 = vunpack.c.l.b16 %v176
    %v1024 = vunpack.c.h.b16 %v176
    %v1025 = vunpack.c.l.b16 %v177
    %v1026 = vunpack.c.h.b16 %v177
    %v1027 = vunpack.c.l.b16 %v178
    %v1028 = vunpack.c.h.b16 %v178
    %v1029 = vunpack.c.l.b16 %v179
    %v1030 = vunpack.c.h.b16 %v179
    %v1031 = vunpack.c.l.b16 %v180
    %v1032 = vunpack.c.h.b16 %v180
    %v1033 = vunpack.c.l.b16 %v181
    %v1034 = vunpack.c.h.b16 %v181
    %v1035 = vunpack.c.l.b16 %v182
    %v1036 = vunpack.c.h.b16 %v182
    %v1037 = vunpack.c.l.b16 %v183
    %v1038 = vunpack.c.h.b16 %v183
    %v1039 = vunpack.c.l.b16 %v184
    %v1040 = vunpack.c.h.b16 %v184
    %v1041 = vunpack.c.l.b16 %v185
    %v1042 = vunpack.c.h.b16 %v185
    %v1043 = vunpack.c.l.b16 %v186
    %v1044 = vunpack.c.h.b16 %v186
    %v1045 = vunpack.c.l.b16 %v187
    %v1046 = vunpack.c.h.b16 %v187
    %v1047 = vunpack.c.l.b16 %v188
    %v1048 = vunpack.c.h.b16 %v188
    %v1049 = vunpack.c.l.b16 %v189
    %v1050 = vunpack.c.h.b16 %v189
    %v1051 = vunpack.c.l.b16 %v190
    %v1052 = vunpack.c.h.b16 %v190
    %v1053 = vunpack.c.l.b16 %v191
    %v1054 = vunpack.c.h.b16 %v191
    %v1055 = vunpack.c.l.b16 %v192
    %v1056 = vunpack.c.h.b16 %v192
    %v1057 = vunpack.c.l.b16 %v193
    %v1058 = vunpack.c.h.b16 %v193
    %v1059 = vunpack.c.l.b16 %v194
    %v1060 = vunpack.c.h.b16 %v194
    %v1061 = vunpack.c.l.b16 %v195
    %v1062 = vunpack.c.h.b16 %v195
    %v1063 = vunpack.c.l.b16 %v196
    %v1064 = vunpack.c.h.b16 %v196
    %v1065 = vunpack.c.l.b16 %v197
    %v1066 = vunpack.c.h.b16 %v197
    %v1067 = vunpack.c.l.b16 %v198
    %v1068 = vunpack.c.h.b16 %v198
    %v1069 = vunpack.c.l.b16 %v199
    %v1070 = vunpack.c.h.b16 %v199
    %v1071 = vunpack.c.l.b16 %v200
    %v1072 = vunpack.c.h.b16 %v200
    %v1073 = vunpack.c.l.b16 %v201
    %v1074 = vunpack.c.h.b16 %v201
    %v1075 = vunpack.c.l.b16 %v202
    %v1076 = vunpack.c.h.b16 %v202
    %v1077 = vunpack.c.l.b16 %v203
    %v1078 = vunpack.c.h.b16 %v203
    %v1079 = vunpack.c.l.b16 %v204
    %v1080 = vunpack.c.h.b16 %v204
    %v1081 = vunpack.c.l.b16 %v205
    %v1082 = vunpack.c.h.b16 %v205
    %v1083 = vunpack.c.l.b16 %v206
    %v1084 = vunpack.c.h.b16 %v206
    %v1085 = vunpack.c.l.b16 %v207
    %v1086 = vunpack.c.h.b16 %v207
    %v1087 = vunpack.c.l.b16 %v208
    %v1088 = vunpack.c.h.b16 %v208
    %v1089 = vunpack.c.l.b16 %v209
    %v1090 = vunpack.c.h.b16 %v209
    %v1091 = vunpack.c.l.b16 %v210
    %v1092 = vunpack.c.h.b16 %v210
    %v1093 = vunpack.c.l.b16 %v211
    %v1094 = vunpack.c.h.b16 %v211
    %v1095 = vunpack.c.l.b16 %v212
    %v1096 = vunpack.c.h.b16 %v212
    %v1097 = vunpack.c.l.b16 %v213
    %v1098 = vunpack.c.h.b16 %v213
    %v1099 = vunpack.c.l.b16 %v214
    %v1100 = vunpack.c.h.b16 %v214
    %v1101 = vunpack.c.l.b16 %v215
    %v1102 = vunpack.c.h.b16 %v215
    %v1103 = vunpack.c.l.b16 %v216
    %v1104 = vunpack.c.h.b16 %v216
    %v1105 = vunpack.c.l.b16 %v217
    %v1106 = vunpack.c.h.b16 %v217
    %v1107 = vunpack.c.l.b16 %v218
    %v1108 = vunpack.c.h.b16 %v218
    %v1109 = vunpack.c.l.b16 %v219
    %v1110 = vunpack.c.h.b16 %v219
    %v1111 = vunpack.c.l.b16 %v220
    %v1112 = vunpack.c.h.b16 %v220
    %v1113 = vunpack.c.l.b16 %v221
    %v1114 = vunpack.c.h.b16 %v221
    %v1115 = vunpack.c.l.b16 %v222
    %v1116 = vunpack.c.h.b16 %v222
    %v1117 = vunpack.c.l.b16 %v223
    %v1118 = vunpack.c.h.b16 %v223
    %v1119 = vunpack.c.l.b16 %v224
    %v1120 = vunpack.c.h.b16 %v224
    %v1121 = vunpack.c.l.b16 %v225
    %v1122 = vunpack.c.h.b16 %v225
    %v1123 = vunpack.c.l.b16 %v226
    %v1124 = vunpack.c.h.b16 %v226
    %v1125 = vunpack.c.l.b16 %v227
    %v1126 = vunpack.c.h.b16 %v227
    %v1127 = vunpack.c.l.b16 %v228
    %v1128 = vunpack.c.h.b16 %v228
    %v1129 = vunpack.c.l.b16 %v229
    %v1130 = vunpack.c.h.b16 %v229
    %v1131 = vunpack.c.l.b16 %v230
    %v1132 = vunpack.c.h.b16 %v230
    %v1133 = vunpack.c.l.b16 %v231
    %v1134 = vunpack.c.h.b16 %v231
    %v1135 = vunpack.c.l.b16 %v232
    %v1136 = vunpack.c.h.b16 %v232
    %v1137 = vunpack.c.l.b16 %v233
    %v1138 = vunpack.c.h.b16 %v233
    %v1139 = vunpack.c.l.b16 %v234
    %v1140 = vunpack.c.h.b16 %v234
    %v1141 = vunpack.c.l.b16 %v235
    %v1142 = vunpack.c.h.b16 %v235
    %v1143 = vunpack.c.l.b16 %v236
    %v1144 = vunpack.c.h.b16 %v236
    %v1145 = vunpack.c.l.b16 %v237
    %v1146 = vunpack.c.h.b16 %v237
    %v1147 = vunpack.c.l.b16 %v238
    %v1148 = vunpack.c.h.b16 %v238
    %v1149 = vunpack.c.l.b16 %v239
    %v1150 = vunpack.c.h.b16 %v239
    %v1151 = vunpack.c.l.b16 %v240
    %v1152 = vunpack.c.h.b16 %v240
    %v1153 = vunpack.c.l.b16 %v241
    %v1154 = vunpack.c.h.b16 %v241
    %v1155 = vunpack.c.l.b16 %v242
    %v1156 = vunpack.c.h.b16 %v242
    %v1157 = vunpack.c.l.b16 %v243
    %v1158 = vunpack.c.h.b16 %v243
    %v1159 = vunpack.c.l.b16 %v244
    %v1160 = vunpack.c.h.b16 %v244
    %v1161 = vunpack.c.l.b16 %v245
    %v1162 = vunpack.c.h.b16 %v245
    %v1163 = vunpack.c.l.b16 %v246
    %v1164 = vunpack.c.h.b16 %v246
    %v1165 = vunpack.c.l.b16 %v247
    %v1166 = vunpack.c.h.b16 %v247
    %v1167 = vunpack.c.l.b16 %v248
    %v1168 = vunpack.c.h.b16 %v248
    %v1169 = vunpack.c.l.b16 %v249
    %v1170 = vunpack.c.h.b16 %v249
    %v1171 = vunpack.c.l.b16 %v250
    %v1172 = vunpack.c.h.b16 %v250
    %v1173 = vunpack.c.l.b16 %v251
    %v1174 = vunpack.c.h.b16 %v251
    %v1175 = vunpack.c.l.b16 %v252
    %v1176 = vunpack.c.h.b16 %v252
    %v1177 = vunpack.c.l.b16 %v253
    %v1178 = vunpack.c.h.b16 %v253
    %v1179 = vunpack.c.l.b16 %v254
    %v1180 = vunpack.c.h.b16 %v254
    %v1181 = vunpack.c.l.b16 %v255
    %v1182 = vunpack.c.h.b16 %v255
    %v1183 = vunpack.c.l.b16 %v256
    %v1184 = vunpack.c.h.b16 %v256
    %v1185 = vunpack.c.l.b16 %v257
    %v1186 = vunpack.c.h.b16 %v257
    %v1187 = vunpack.c.l.b16 %v258
    %v1188 = vunpack.c.h.b16 %v258
    %v1189 = vunpack.c.l.b16 %v259
    %v1190 = vunpack.c.h.b16 %v259
    %v1191 = vunpack.c.l.b16 %v260
    %v1192 = vunpack.c.h.b16 %v260
    %v1193 = vunpack.c.l.b16 %v261
    %v1194 = vunpack.c.h.b16 %v261
    %v1195 = vunpack.c.l.b16 %v262
    %v1196 = vunpack.c.h.b16 %v262
    %v1197 = vunpack.c.l.b16 %v263
    %v1198 = vunpack.c.h.b16 %v263
    %v1199 = vunpack.c.l.b16 %v264
    %v1200 = vunpack.c.h.b16 %v264
    %v1201 = vunpack.c.l.b16 %v265
    %v1202 = vunpack.c.h.b16 %v265
    %v1203 = vunpack.c.l.b16 %v266
    %v1204 = vunpack.c.h.b16 %v266
    %v1205 = vunpack.c.l.b16 %v267
    %v1206 = vunpack.c.h.b16 %v267
    %v1207 = vunpack.c.l.b16 %v268
    %v1208 = vunpack.c.h.b16 %v268
    %v1209 = vunpack.c.l.b16 %v269
    %v1210 = vunpack.c.h.b16 %v269
    %v1211 = vunpack.c.l.b16 %v270
    %v1212 = vunpack.c.h.b16 %v270
    %v1213 = vunpack.c.l.b16 %v271
    %v1214 = vunpack.c.h.b16 %v271
    %v1215 = vunpack.c.l.b16 %v272
    %v1216 = vunpack.c.h.b16 %v272
    %v1217 = vunpack.c.l.b16 %v273
    %v1218 = vunpack.c.h.b16 %v273
    %v1219 = vunpack.c.l.b16 %v274
    %v1220 = vunpack.c.h.b16 %v274
    %v1221 = vunpack.c.l.b16 %v275
    %v1222 = vunpack.c.h.b16 %v275
    %v1223 = vunpack.c.l.b16 %v276
    %v1224 = vunpack.c.h.b16 %v276
    %v1225 = vunpack.c.l.b16 %v277
    %v1226 = vunpack.c.h.b16 %v277
    %v1227 = vunpack.c.l.b16 %v278
    %v1228 = vunpack.c.h.b16 %v278
    %v1229 = vunpack.c.l.b16 %v279
    %v1230 = vunpack.c.h.b16 %v279
    %v1231 = vunpack.c.l.b16 %v280
    %v1232 = vunpack.c.h.b16 %v280
    %v1233 = vunpack.c.l.b16 %v281
    %v1234 = vunpack.c.h.b16 %v281
    %v1235 = vunpack.c.l.b16 %v282
    %v1236 = vunpack.c.h.b16 %v282
    %v1237 = vunpack.c.l.b16 %v283
    %v1238 = vunpack.c.h.b16 %v283
    %v1239 = vunpack.c.l.b16 %v284
    %v1240 = vunpack.c.h.b16 %v284
    %v1241 = vunpack.c.l.b16 %v285
    %v1242 = vunpack.c.h.b16 %v285
    %v1243 = vunpack.c.l.b16 %v286
    %v1244 = vunpack.c.h.b16 %v286
    %v1245 = vunpack.c.l.b16 %v287
    %v1246 = vunpack.c.h.b16 %v287
    %v1247 = vunpack.c.l.b16 %v288
    %v1248 = vunpack.c.h.b16 %v288
    %v1249 = vunpack.c.l.b16 %v289
    %v1250 = vunpack.c.h.b16 %v289
    %v1251 = vunpack.c.l.b16 %v290
    %v1252 = vunpack.c.h.b16 %v290
    %v1253 = vunpack.c.l.b16 %v291
    %v1254 = vunpack.c.h.b16 %v291
    %v1255 = vunpack.c.l.b16 %v292
    %v1256 = vunpack.c.h.b16 %v292
    %v1257 = vunpack.c.l.b16 %v293
    %v1258 = vunpack.c.h.b16 %v293
    %v1259 = vunpack.c.l.b16 %v294
    %v1260 = vunpack.c.h.b16 %v294
    %v1261 = vunpack.c.l.b16 %v295
    %v1262 = vunpack.c.h.b16 %v295
    %v1263 = vunpack.c.l.b16 %v296
    %v1264 = vunpack.c.h.b16 %v296
    %v1265 = vunpack.c.l.b16 %v297
    %v1266 = vunpack.c.h.b16 %v297
    %v1267 = vunpack.c.l.b16 %v298
    %v1268 = vunpack.c.h.b16 %v298
    %v1269 = vunpack.c.l.b16 %v299
    %v1270 = vunpack.c.h.b16 %v299
    %v1271 = vunpack.c.l.b16 %v300
    %v1272 = vunpack.c.h.b16 %v300
    %v1273 = vunpack.c.l.b16 %v301
    %v1274 = vunpack.c.h.b16 %v301
    %v1275 = vunpack.c.l.b16 %v302
    %v1276 = vunpack.c.h.b16 %v302
    %v1277 = vunpack.c.l.b16 %v303
    %v1278 = vunpack.c.h.b16 %v303
    %v1279 = vunpack.c.l.b16 %v304
    %v1280 = vunpack.c.h.b16 %v304
    %v1281 = vunpack.c.l.b16 %v305
    %v1282 = vunpack.c.h.b16 %v305
    %v1283 = vunpack.c.l.b16 %v306
    %v1284 = vunpack.c.h.b16 %v306
    %v1285 = vunpack.c.l.b16 %v307
    %v1286 = vunpack.c.h.b16 %v307
    %v1287 = vunpack.c.l.b16 %v308
    %v1288 = vunpack.c.h.b16 %v308
    %v1289 = vunpack.c.l.b16 %v309
    %v1290 = vunpack.c.h.b16 %v309
    %v1291 = vunpack.c.l.b16 %v310
    %v1292 = vunpack.c.h.b16 %v310
    %v1293 = vunpack.c.l.b16 %v311
    %v1294 = vunpack.c.h.b16 %v311
    %v1295 = vunpack.c.l.b16 %v312
    %v1296 = vunpack.c.h.b16 %v312
    %v1297 = vunpack.c.l.b16 %v313
    %v1298 = vunpack.c.h.b16 %v313
    %v1299 = vunpack.c.l.b16 %v314
    %v1300 = vunpack.c.h.b16 %v314
    %v1301 = vunpack.c.l.b16 %v315
    %v1302 = vunpack.c.h.b16 %v315
    %v1303 = vunpack.c.l.b16 %v316
    %v1304 = vunpack.c.h.b16 %v316
    %v1305 = vunpack.c.l.b16 %v317
    %v1306 = vunpack.c.h.b16 %v317
    %v1307 = vunpack.c.l.b16 %v318
    %v1308 = vunpack.c.h.b16 %v318
    %v1309 = vunpack.c.l.b16 %v319
    %v1310 = vunpack.c.h.b16 %v319
    %v1311 = vunpack.c.l.b16 %v320
    %v1312 = vunpack.c.h.b16 %v320
    %v1313 = vunpack.c.l.b16 %v321
    %v1314 = vunpack.c.h.b16 %v321
    %v1315 = vunpack.c.l.b16 %v322
    %v1316 = vunpack.c.h.b16 %v322
    %v1317 = vunpack.c.l.b16 %v323
    %v1318 = vunpack.c.h.b16 %v323
    %v1319 = vunpack.c.l.b16 %v324
    %v1320 = vunpack.c.h.b16 %v324
    %v1321 = vunpack.c.l.b16 %v325
    %v1322 = vunpack.c.h.b16 %v325
    %v1323 = vunpack.c.l.b16 %v326
    %v1324 = vunpack.c.h.b16 %v326
    %v1325 = vunpack.c.l.b16 %v327
    %v1326 = vunpack.c.h.b16 %v327
    %v1327 = vunpack.c.l.b16 %v328
    %v1328 = vunpack.c.h.b16 %v328
    %v1329 = vunpack.c.l.b16 %v329
    %v1330 = vunpack.c.h.b16 %v329
    %v1331 = vunpack.c.l.b16 %v330
    %v1332 = vunpack.c.h.b16 %v330
    %v1333 = vunpack.c.l.b16 %v331
    %v1334 = vunpack.c.h.b16 %v331
    %v1335 = vunpack.c.l.b16 %v332
    %v1336 = vunpack.c.h.b16 %v332
    %v1337 = vunpack.c.l.b16 %v333
    %v1338 = vunpack.c.h.b16 %v333
    %v1339 = vunpack.c.l.b16 %v334
    %v1340 = vunpack.c.h.b16 %v334
    %v1341 = vunpack.c.l.b16 %v335
    %v1342 = vunpack.c.h.b16 %v335
    %v1343 = vunpack.c.l.b16 %v336
    %v1344 = vunpack.c.h.b16 %v336
    %v1345 = vunpack.c.l.b16 %v337
    %v1346 = vunpack.c.h.b16 %v337
    %v1347 = vunpack.c.l.b16 %v338
    %v1348 = vunpack.c.h.b16 %v338
    %v1349 = vunpack.c.l.b16 %v339
    %v1350 = vunpack.c.h.b16 %v339
    %v1351 = vunpack.c.l.b16 %v340
    %v1352 = vunpack.c.h.b16 %v340
    %v1353 = vunpack.c.l.b16 %v341
    %v1354 = vunpack.c.h.b16 %v341
    %v1355 = vunpack.c.l.b16 %v342
    %v1356 = vunpack.c.h.b16 %v342
    %v1357 = vunpack.c.l.b16 %v343
    %v1358 = vunpack.c.h.b16 %v343
    %v1359 = vunpack.c.l.b16 %v344
    %v1360 = vunpack.c.h.b16 %v344
    %v1361 = vunpack.c.l.b16 %v345
    %v1362 = vunpack.c.h.b16 %v345
    %v1363 = vunpack.c.l.b16 %v346
    %v1364 = vunpack.c.h.b16 %v346
    %v1365 = vunpack.c.l.b16 %v347
    %v1366 = vunpack.c.h.b16 %v347
    %v1367 = vunpack.c.l.b16 %v348
    %v1368 = vunpack.c.h.b16 %v348
    %v1369 = vunpack.c.l.b16 %v349
    %v1370 = vunpack.c.h.b16 %v349
    %v1371 = vunpack.c.l.b16 %v350
    %v1372 = vunpack.c.h.b16 %v350
    %v1373 = vunpack.c.l.b16 %v351
    %v1374 = vunpack.c.h.b16 %v351
    %v1375 = vunpack.c.l.b16 %v352
    %v1376 = vunpack.c.h.b16 %v352
    %v1377 = vunpack.c.l.b16 %v353
    %v1378 = vunpack.c.h.b16 %v353
    %v1379 = vunpack.c.l.b16 %v354
    %v1380 = vunpack.c.h.b16 %v354
    %v1381 = vunpack.c.l.b16 %v355
    %v1382 = vunpack.c.h.b16 %v355
    %v1383 = vunpack.c.l.b16 %v356
    %v1384 = vunpack.c.h.b16 %v356
    %v1385 = vunpack.c.l.b16 %v357
    %v1386 = vunpack.c.h.b16 %v357
    %v1387 = vunpack.c.l.b16 %v358
    %v1388 = vunpack.c.h.b16 %v358
    %v1389 = vunpack.c.l.b16 %v359
    %v1390 = vunpack.c.h.b16 %v359
    %v1391 = vunpack.c.l.b16 %v360
    %v1392 = vunpack.c.h.b16 %v360
    %v1393 = vunpack.c.l.b16 %v361
    %v1394 = vunpack.c.h.b16 %v361
    %v1395 = vunpack.c.l.b16 %v362
    %v1396 = vunpack.c.h.b16 %v362
    %v1397 = vunpack.c.l.b16 %v363
    %v1398 = vunpack.c.h.b16 %v363
    %v1399 = vunpack.c.l.b16 %v364
    %v1400 = vunpack.c.h.b16 %v364
    %v1401 = vunpack.c.l.b16 %v365
    %v1402 = vunpack.c.h.b16 %v365
    %v1403 = vunpack.c.l.b16 %v366
    %v1404 = vunpack.c.h.b16 %v366
    %v1405 = vunpack.c.l.b16 %v367
    %v1406 = vunpack.c.h.b16 %v367
    %v1407 = vunpack.c.l.b16 %v368
    %v1408 = vunpack.c.h.b16 %v368
    %v1409 = vunpack.c.l.b16 %v369
    %v1410 = vunpack.c.h.b16 %v369
    %v1411 = vunpack.c.l.b16 %v370
    %v1412 = vunpack.c.h.b16 %v370
    %v1413 = vunpack.c.l.b16 %v371
    %v1414 = vunpack.c.h.b16 %v371
    %v1415 = vunpack.c.l.b16 %v372
    %v1416 = vunpack.c.h.b16 %v372
    %v1417 = vunpack.c.l.b16 %v373
    %v1418 = vunpack.c.h.b16 %v373
    %v1419 = vunpack.c.l.b16 %v374
    %v1420 = vunpack.c.h.b16 %v374
    %v1421 = vunpack.c.l.b16 %v375
    %v1422 = vunpack.c.h.b16 %v375
    %v1423 = vunpack.c.l.b16 %v376
    %v1424 = vunpack.c.h.b16 %v376
    %v1425 = vunpack.c.l.b16 %v377
    %v1426 = vunpack.c.h.b16 %v377
    %v1427 = vunpack.c.l.b16 %v378
    %v1428 = vunpack.c.h.b16 %v378
    %v1429 = vunpack.c.l.b16 %v379
    %v1430 = vunpack.c.h.b16 %v379
    %v1431 = vunpack.c.l.b16 %v380
    %v1432 = vunpack.c.h.b16 %v380
    %v1433 = vunpack.c.l.b16 %v381
    %v1434 = vunpack.c.h.b16 %v381
    %v1435 = vunpack.c.l.b16 %v382
    %v1436 = vunpack.c.h.b16 %v382
    %v1437 = vunpack.c.l.b16 %v383
    %v1438 = vunpack.c.h.b16 %v383
    %v1439 = vunpack.c.l.b16 %v384
    %v1440 = vunpack.c.h.b16 %v384
    %v1441 = vunpack.c.l.b16 %v385
    %v1442 = vunpack.c.h.b16 %v385
    %v1443 = vunpack.c.l.b16 %v386
    %v1444 = vunpack.c.h.b16 %v386
    %v1445 = vunpack.c.l.b16 %v387
    %v1446 = vunpack.c.h.b16 %v387
    %v1447 = vunpack.c.l.b16 %v388
    %v1448 = vunpack.c.h.b16 %v388
    %v1449 = vunpack.c.l.b16 %v389
    %v1450 = vunpack.c.h.b16 %v389
    %v1451 = vunpack.c.l.b16 %v390
    %v1452 = vunpack.c.h.b16 %v390
    %v1453 = vunpack.c.l.b16 %v391
    %v1454 = vunpack.c.h.b16 %v391
    %v1455 = vunpack.c.l.b16 %v392
    %v1456 = vunpack.c.h.b16 %v392
    %v1457 = vunpack.c.l.b16 %v393
    %v1458 = vunpack.c.h.b16 %v393
    %v1459 = vunpack.c.l.b16 %v394
    %v1460 = vunpack.c.h.b16 %v394
    %v1461 = vunpack.c.l.b16 %v395
    %v1462 = vunpack.c.h.b16 %v395
    %v1463 = vunpack.c.l.b16 %v396
    %v1464 = vunpack.c.h.b16 %v396
    %v1465 = vunpack.c.l.b16 %v397
    %v1466 = vunpack.c.h.b16 %v397
    %v1467 = vunpack.c.l.b16 %v398
    %v1468 = vunpack.c.h.b16 %v398
    %v1469 = vunpack.c.l.b16 %v399
    %v1470 = vunpack.c.h.b16 %v399
    %v1471 = vunpack.c.l.b16 %v400
    %v1472 = vunpack.c.h.b16 %v400
    %v1473 = vunpack.c.l.b16 %v401
    %v1474 = vunpack.c.h.b16 %v401
    %v1475 = vunpack.c.l.b16 %v402
    %v1476 = vunpack.c.h.b16 %v402
    %v1477 = vunpack.c.l.b16 %v403
    %v1478 = vunpack.c.h.b16 %v403
    %v1479 = vunpack.c.l.b16 %v404
    %v1480 = vunpack.c.h.b16 %v404
    %v1481 = vunpack.c.l.b16 %v405
    %v1482 = vunpack.c.h.b16 %v405
    %v1483 = vunpack.c.l.b16 %v406
    %v1484 = vunpack.c.h.b16 %v406
    %v1485 = vunpack.c.l.b16 %v407
    %v1486 = vunpack.c.h.b16 %v407
    %v1487 = vunpack.c.l.b16 %v408
    %v1488 = vunpack.c.h.b16 %v408
    %v1489 = vpack.c.b16 %v823, %v817
    %v1490 = vpack.c.b16 %v824, %v818
    %v1491 = vpack.c.b16 %v825, %v819
    %v1492 = vpack.c.b16 %v826, %v820
    %v1493 = vpack.c.b16 %v827, %v821
    %v1494 = vpack.c.b16 %v828, %v822
    %v1495 = vpack.c.b16 %v835, %v829
    %v1496 = vpack.c.b16 %v836, %v830
    %v1497 = vpack.c.b16 %v837, %v831
    %v1498 = vpack.c.b16 %v838, %v832
    %v1499 = vpack.c.b16 %v839, %v833
    %v1500 = vpack.c.b16 %v840, %v834
    %v1501 = vpack.c.b16 %v847, %v841
    %v1502 = vpack.c.b16 %v848, %v842
    %v1503 = vpack.c.b16 %v849, %v843
    %v1504 = vpack.c.b16 %v850, %v844
    %v1505 = vpack.c.b16 %v851, %v845
    %v1506 = vpack.c.b16 %v852, %v846
    %v1507 = vpack.c.b16 %v859, %v853
    %v1508 = vpack.c.b16 %v860, %v854
    %v1509 = vpack.c.b16 %v861, %v855
    %v1510 = vpack.c.b16 %v862, %v856
    %v1511 = vpack.c.b16 %v863, %v857
    %v1512 = vpack.c.b16 %v864, %v858
    %v1513 = vpack.c.b16 %v871, %v865
    %v1514 = vpack.c.b16 %v872, %v866
    %v1515 = vpack.c.b16 %v873, %v867
    %v1516 = vpack.c.b16 %v874, %v868
    %v1517 = vpack.c.b16 %v875, %v869
    %v1518 = vpack.c.b16 %v876, %v870
    %v1519 = vpack.c.b16 %v883, %v877
    %v1520 = vpack.c.b16 %v884, %v878
    %v1521 = vpack.c.b16 %v885, %v879
    %v1522 = vpack.c.b16 %v886, %v880
    %v1523 = vpack.c.b16 %v887, %v881
    %v1524 = vpack.c.b16 %v888, %v882
    %v1525 = vpack.c.b16 %v895, %v889
    %v1526 = vpack.c.b16 %v896, %v890
    %v1527 = vpack.c.b16 %v897, %v891
    %v1528 = vpack.c.b16 %v898, %v892
    %v1529 = vpack.c.b16 %v899, %v893
    %v1530 = vpack.c.b16 %v900, %v894
    %v1531 = vpack.c.b16 %v907, %v901
    %v1532 = vpack.c.b16 %v908, %v902
    %v1533 = vpack.c.b16 %v909, %v903
    %v1534 = vpack.c.b16 %v910, %v904
    %v1535 = vpack.c.b16 %v911, %v905
    %v1536 = vpack.c.b16 %v912, %v906
    %v1537 = vpack.c.b16 %v919, %v913
    %v1538 = vpack.c.b16 %v920, %v914
    %v1539 = vpack.c.b16 %v921, %v915
    %v1540 = vpack.c.b16 %v922, %v916
    %v1541 = vpack.c.b16 %v923, %v917
    %v1542 = vpack.c.b16 %v924, %v918
    %v1543 = vpack.c.b16 %v931, %v925
    %v1544 = vpack.c.b16 %v932, %v926
    %v1545 = vpack.c.b16 %v933, %v927
    %v1546 = vpack.c.b16 %v934, %v928
    %v1547 = vpack.c.b16 %v935, %v929
    %v1548 = vpack.c.b16 %v936, %v930
    %v1549 = vpack.c.b16 %v943, %v937
    %v1550 = vpack.c.b16 %v944, %v938
    %v1551 = vpack.c.b16 %v945, %v939
    %v1552 = vpack.c.b16 %v946, %v940
    %v1553 = vpack.c.b16 %v947, %v941
    %v1554 = vpack.c.b16 %v948, %v942
    %v1555 = vpack.c.b16 %v955, %v949
    %v1556 = vpack.c.b16 %v956, %v950
    %v1557 = vpack.c.b16 %v957, %v951
    %v1558 = vpack.c.b16 %v958, %v952
    %v1559 = vpack.c.b16 %v959, %v953
    %v1560 = vpack.c.b16 %v960, %v954
    %v1561 = vpack.c.b16 %v967, %v961
    %v1562 = vpack.c.b16 %v968, %v962
    %v1563 = vpack.c.b16 %v969, %v963
    %v1564 = vpack.c.b16 %v970, %v964
    %v1565 = vpack.c.b16 %v971, %v965
    %v1566 = vpack.c.b16 %v972, %v966
    %v1567 = vpack.c.b16 %v979, %v973
    %v1568 = vpack.c.b16 %v980, %v974
    %v1569 = vpack.c.b16 %v981, %v975
    %v1570 = vpack.c.b16 %v982, %v976
    %v1571 = vpack.c.b16 %v983, %v977
    %v1572 = vpack.c.b16 %v984, %v978
    %v1573 = vpack.c.b16 %v991, %v985
    %v1574 = vpack.c.b16 %v992, %v986
    %v1575 = vpack.c.b16 %v993, %v987
    %v1576 = vpack.c.b16 %v994, %v988
    %v1577 = vpack.c.b16 %v995, %v989
    %v1578 = vpack.c.b16 %v996, %v990
    %v1579 = vpack.c.b16 %v1003, %v997
    %v1580 = vpack.c.b16 %v1004, %v998
    %v1581 = vpack.c.b16 %v1005, %v999
    %v1582 = vpack.c.b16 %v1006, %v1000
    %v1583 = vpack.c.b16 %v1007, %v1001
    %v1584 = vpack.c.b16 %v1008, %v1002
    %v1585 = vpack.c.b16 %v1015, %v1009
    %v1586 = vpack.c.b16 %v1016, %v1010
    %v1587 = vpack.c.b16 %v1017, %v1011
    %v1588 = vpack.c.b16 %v1018, %v1012
    %v1589 = vpack.c.b16 %v1019, %v1013
    %v1590 = vpack.c.b16 %v1020, %v1014
    %v1591 = vpack.c.b16 %v1027, %v1021
    %v1592 = vpack.c.b16 %v1028, %v1022
    %v1593 = vpack.c.b16 %v1029, %v1023
    %v1594 = vpack.c.b16 %v1030, %v1024
    %v1595 = vpack.c.b16 %v1031, %v1025
    %v1596 = vpack.c.b16 %v1032, %v1026
    %v1597 = vpack.c.b16 %v1039, %v1033
    %v1598 = vpack.c.b16 %v1040, %v1034
    %v1599 = vpack.c.b16 %v1041, %v1035
    %v1600 = vpack.c.b16 %v1042, %v1036
    %v1601 = vpack.c.b16 %v1043, %v1037
    %v1602 = vpack.c.b16 %v1044, %v1038
    %v1603 = vpack.c.b16 %v1051, %v1045
    %v1604 = vpack.c.b16 %v1052, %v1046
    %v1605 = vpack.c.b16 %v1053, %v1047
    %v1606 = vpack.c.b16 %v1054, %v1048
    %v1607 = vpack.c.b16 %v1055, %v1049
    %v1608 = vpack.c.b16 %v1056, %v1050
    %v1609 = vpack.c.b16 %v1063, %v1057
    %v1610 = vpack.c.b16 %v1064, %v1058
    %v1611 = vpack.c.b16 %v1065, %v1059
    %v1612 = vpack.c.b16 %v1066, %v1060
    %v1613 = vpack.c.b16 %v1067, %v1061
    %v1614 = vpack.c.b16 %v1068, %v1062
    %v1615 = vpack.c.b16 %v1075, %v1069
    %v1616 = vpack.c.b16 %v1076, %v1070
    %v1617 = vpack.c.b16 %v1077, %v1071
    %v1618 = vpack.c.b16 %v1078, %v1072
    %v1619 = vpack.c.b16 %v1079, %v1073
    %v1620 = vpack.c.b16 %v1080, %v1074
    %v1621 = vpack.c.b16 %v1087, %v1081
    %v1622 = vpack.c.b16 %v1088, %v1082
    %v1623 = vpack.c.b16 %v1089, %v1083
    %v1624 = vpack.c.b16 %v1090, %v1084
    %v1625 = vpack.c.b16 %v1091, %v1085
    %v1626 = vpack.c.b16 %v1092, %v1086
    %v1627 = vpack.c.b16 %v1099, %v1093
    %v1628 = vpack.c.b16 %v1100, %v1094
    %v1629 = vpack.c.b16 %v1101, %v1095
    %v1630 = vpack.c.b16 %v1102, %v1096
    %v1631 = vpack.c.b16 %v1103, %v1097
    %v1632 = vpack.c.b16 %v1104, %v1098
    %v1633 = vpack.c.b16 %v1111, %v1105
    %v1634 = vpack.c.b16 %v1112, %v1106
    %v1635 = vpack.c.b16 %v1113, %v1107
    %v1636 = vpack.c.b16 %v1114, %v1108
    %v1637 = vpack.c.b16 %v1115, %v1109
    %v1638 = vpack.c.b16 %v1116, %v1110
    %v1639 = vpack.c.b16 %v1123, %v1117
    %v1640 = vpack.c.b16 %v1124, %v1118
    %v1641 = vpack.c.b16 %v1125, %v1119
    %v1642 = vpack.c.b16 %v1126, %v1120
    %v1643 = vpack.c.b16 %v1127, %v1121
    %v1644 = vpack.c.b16 %v1128, %v1122
    %v1645 = vpack.c.b16 %v1135, %v1129
    %v1646 = vpack.c.b16 %v1136, %v1130
    %v1647 = vpack.c.b16 %v1137, %v1131
    %v1648 = vpack.c.b16 %v1138, %v1132
    %v1649 = vpack.c.b16 %v1139, %v1133
    %v1650 = vpack.c.b16 %v1140, %v1134
    %v1651 = vpack.c.b16 %v1147, %v1141
    %v1652 = vpack.c.b16 %v1148, %v1142
    %v1653 = vpack.c.b16 %v1149, %v1143
    %v1654 = vpack.c.b16 %v1150, %v1144
    %v1655 = vpack.c.b16 %v1151, %v1145
    %v1656 = vpack.c.b16 %v1152, %v1146
    %v1657 = vpack.c.b16 %v1159, %v1153
    %v1658 = vpack.c.b16 %v1160, %v1154
    %v1659 = vpack.c.b16 %v1161, %v1155
    %v1660 = vpack.c.b16 %v1162, %v1156
    %v1661 = vpack.c.b16 %v1163, %v1157
    %v1662 = vpack.c.b16 %v1164, %v1158
    %v1663 = vpack.c.b16 %v1171, %v1165
    %v1664 = vpack.c.b16 %v1172, %v1166
    %v1665 = vpack.c.b16 %v1173, %v1167
    %v1666 = vpack.c.b16 %v1174, %v1168
    %v1667 = vpack.c.b16 %v1175, %v1169
    %v1668 = vpack.c.b16 %v1176, %v1170
    %v1669 = vpack.c.b16 %v1183, %v1177
    %v1670 = vpack.c.b16 %v1184, %v1178
    %v1671 = vpack.c.b16 %v1185, %v1179
    %v1672 = vpack.c.b16 %v1186, %v1180
    %v1673 = vpack.c.b16 %v1187, %v1181
    %v1674 = vpack.c.b16 %v1188, %v1182
    %v1675 = vpack.c.b16 %v1195, %v1189
    %v1676 = vpack.c.b16 %v1196, %v1190
    %v1677 = vpack.c.b16 %v1197, %v1191
    %v1678 = vpack.c.b16 %v1198, %v1192
    %v1679 = vpack.c.b16 %v1199, %v1193
    %v1680 = vpack.c.b16 %v1200, %v1194
    %v1681 = vpack.c.b16 %v1207, %v1201
    %v1682 = vpack.c.b16 %v1208, %v1202
    %v1683 = vpack.c.b16 %v1209, %v1203
    %v1684 = vpack.c.b16 %v1210, %v1204
    %v1685 = vpack.c.b16 %v1211, %v1205
    %v1686 = vpack.c.b16 %v1212, %v1206
    %v1687 = vpack.c.b16 %v1219, %v1213
    %v1688 = vpack.c.b16 %v1220, %v1214
    %v1689 = vpack.c.b16 %v1221, %v1215
    %v1690 = vpack.c.b16 %v1222, %v1216
    %v1691 = vpack.c.b16 %v1223, %v1217
    %v1692 = vpack.c.b16 %v1224, %v1218
    %v1693 = vpack.c.b16 %v1231, %v1225
    %v1694 = vpack.c.b16 %v1232, %v1226
    %v1695 = vpack.c.b16 %v1233, %v1227
    %v1696 = vpack.c.b16 %v1234, %v1228
    %v1697 = vpack.c.b16 %v1235, %v1229
    %v1698 = vpack.c.b16 %v1236, %v1230
    %v1699 = vpack.c.b16 %v1243, %v1237
    %v1700 = vpack.c.b16 %v1244, %v1238
    %v1701 = vpack.c.b16 %v1245, %v1239
    %v1702 = vpack.c.b16 %v1246, %v1240
    %v1703 = vpack.c.b16 %v1247, %v1241
    %v1704 = vpack.c.b16 %v1248, %v1242
    %v1705 = vpack.c.b16 %v1255, %v1249
    %v1706 = vpack.c.b16 %v1256, %v1250
    %v1707 = vpack.c.b16 %v1257, %v1251
    %v1708 = vpack.c.b16 %v1258, %v1252
    %v1709 = vpack.c.b16 %v1259, %v1253
    %v1710 = vpack.c.b16 %v1260, %v1254
    %v1711 = vpack.c.b16 %v1267, %v1261
    %v1712 = vpack.c.b16 %v1268, %v1262
    %v1713 = vpack.c.b16 %v1269, %v1263
    %v1714 = vpack.c.b16 %v1270, %v1264
    %v1715 = vpack.c.b16 %v1271, %v1265
    %v1716 = vpack.c.b16 %v1272, %v1266
    %v1717 = vpack.c.b16 %v1279, %v1273
    %v1718 = vpack.c.b16 %v1280, %v1274
    %v1719 = vpack.c.b16 %v1281, %v1275
    %v1720 = vpack.c.b16 %v1282, %v1276
    %v1721 = vpack.c.b16 %v1283, %v1277
    %v1722 = vpack.c.b16 %v1284, %v1278
    %v1723 = vpack.c.b16 %v1291, %v1285
    %v1724 = vpack.c.b16 %v1292, %v1286
    %v1725 = vpack.c.b16 %v1293, %v1287
    %v1726 = vpack.c.b16 %v1294, %v1288
    %v1727 = vpack.c.b16 %v1295, %v1289
    %v1728 = vpack.c.b16 %v1296, %v1290
    %v1729 = vpack.c.b16 %v1303, %v1297
    %v1730 = vpack.c.b16 %v1304, %v1298
    %v1731 = vpack.c.b16 %v1305, %v1299
    %v1732 = vpack.c.b16 %v1306, %v1300
    %v1733 = vpack.c.b16 %v1307, %v1301
    %v1734 = vpack.c.b16 %v1308, %v1302
    %v1735 = vpack.c.b16 %v1315, %v1309
    %v1736 = vpack.c.b16 %v1316, %v1310
    %v1737 = vpack.c.b16 %v1317, %v1311
    %v1738 = vpack.c.b16 %v1318, %v1312
    %v1739 = vpack.c.b16 %v1319, %v1313
    %v1740 = vpack.c.b16 %v1320, %v1314
    %v1741 = vpack.c.b16 %v1327, %v1321
    %v1742 = vpack.c.b16 %v1328, %v1322
    %v1743 = vpack.c.b16 %v1329, %v1323
    %v1744 = vpack.c.b16 %v1330, %v1324
    %v1745 = vpack.c.b16 %v1331, %v1325
    %v1746 = vpack.c.b16 %v1332, %v1326
    %v1747 = vpack.c.b16 %v1339, %v1333
    %v1748 = vpack.c.b16 %v1340, %v1334
    %v1749 = vpack.c.b16 %v1341, %v1335
    %v1750 = vpack.c.b16 %v1342, %v1336
    %v1751 = vpack.c.b16 %v1343, %v1337
    %v1752 = vpack.c.b16 %v1344, %v1338
    %v1753 = vpack.c.b16 %v1351, %v1345
    %v1754 = vpack.c.b16 %v1352, %v1346
    %v1755 = vpack.c.b16 %v1353, %v1347
    %v1756 = vpack.c.b16 %v1354, %v1348
    %v1757 = vpack.c.b16 %v1355, %v1349
    %v1758 = vpack.c.b16 %v1356, %v1350
    %v1759 = vpack.c.b16 %v1363, %v1357
    %v1760 = vpack.c.b16 %v1364, %v1358
    %v1761 = vpack.c.b16 %v1365, %v1359
    %v1762 = vpack.c.b16 %v1366, %v1360
    %v1763 = vpack.c.b16 %v1367, %v1361
    %v1764 = vpack.c.b16 %v1368, %v1362
    %v1765 = vpack.c.b16 %v1375, %v1369
    %v1766 = vpack.c.b16 %v1376, %v1370
    %v1767 = vpack.c.b16 %v1377, %v1371
    %v1768 = vpack.c.b16 %v1378, %v1372
    %v1769 = vpack.c.b16 %v1379, %v1373
    %v1770 = vpack.c.b16 %v1380, %v1374
    %v1771 = vpack.c.b16 %v1387, %v1381
    %v1772 = vpack.c.b16 %v1388, %v1382
    %v1773 = vpack.c.b16 %v1389, %v1383
    %v1774 = vpack.c.b16 %v1390, %v1384
    %v1775 = vpack.c.b16 %v1391, %v1385
    %v1776 = vpack.c.b16 %v1392, %v1386
    %v1777 = vpack.c.b16 %v1399, %v1393
    %v1778 = vpack.c.b16 %v1400, %v1394
    %v1779 = vpack.c.b16 %v1401, %v1395
    %v1780 = vpack.c.b16 %v1402, %v1396
    %v1781 = vpack.c.b16 %v1403, %v1397
    %v1782 = vpack.c.b16 %v1404, %v1398
    %v1783 = vpack.c.b16 %v1411, %v1405
    %v1784 = vpack.c.b16 %v1412, %v1406
    %v1785 = vpack.c.b16 %v1413, %v1407
    %v1786 = vpack.c.b16 %v1414, %v1408
    %v1787 = vpack.c.b16 %v1415, %v1409
    %v1788 = vpack.c.b16 %v1416, %v1410
    %v1789 = vpack.c.b16 %v1423, %v1417
    %v1790 = vpack.c.b16 %v1424, %v1418
    %v1791 = vpack.c.b16 %v1425, %v1419
    %v1792 = vpack.c.b16 %v1426, %v1420
    %v1793 = vpack.c.b16 %v1427, %v1421
    %v1794 = vpack.c.b16 %v1428, %v1422
    %v1795 = vpack.c.b16 %v1435, %v1429
    %v1796 = vpack.c.b16 %v1436, %v1430
    %v1797 = vpack.c.b16 %v1437, %v1431
    %v1798 = vpack.c.b16 %v1438, %v1432
    %v1799 = vpack.c.b16 %v1439, %v1433
    %v1800 = vpack.c.b16 %v1440, %v1434
    %v1801 = vpack.c.b16 %v1447, %v1441
    %v1802 = vpack.c.b16 %v1448, %v1442
    %v1803 = vpack.c.b16 %v1449, %v1443
    %v1804 = vpack.c.b16 %v1450, %v1444
    %v1805 = vpack.c.b16 %v1451, %v1445
    %v1806 = vpack.c.b16 %v1452, %v1446
    %v1807 = vpack.c.b16 %v1459, %v1453
    %v1808 = vpack.c.b16 %v1460, %v1454
    %v1809 = vpack.c.b16 %v1461, %v1455
    %v1810 = vpack.c.b16 %v1462, %v1456
    %v1811 = vpack.c.b16 %v1463, %v1457
    %v1812 = vpack.c.b16 %v1464, %v1458
    %v1813 = vpack.c.b16 %v1471, %v1465
    %v1814 = vpack.c.b16 %v1472, %v1466
    %v1815 = vpack.c.b16 %v1473, %v1467
    %v1816 = vpack.c.b16 %v1474, %v1468
    %v1817 = vpack.c.b16 %v1475, %v1469
    %v1818 = vpack.c.b16 %v1476, %v1470
    %v1819 = vpack.c.b16 %v1483, %v1477
    %v1820 = vpack.c.b16 %v1484, %v1478
    %v1821 = vpack.c.b16 %v1485, %v1479
    %v1822 = vpack.c.b16 %v1486, %v1480
    %v1823 = vpack.c.b16 %v1487, %v1481
    %v1824 = vpack.c.b16 %v1488, %v1482
    %2161 = vmatprep.subr.bf16.mxu0 %v1490
    %2162 = vmatpush1.bf16.msra.mxu0 %v1489
    %2163 = vmatprep.subr.bf16.mxu0 %v1496
    %2164 = vmatpush1.bf16.msra.mxu0 %v1495
    %2165 = vmatprep.subr.bf16.mxu0 %v1502
    %2166 = vmatpush1.bf16.msra.mxu0 %v1501
    %2167 = vmatprep.subr.bf16.mxu0 %v1508
    %2168 = vmatpush1.bf16.msra.mxu0 %v1507
    %2169 = vmatprep.subr.bf16.mxu0 %v1514
    %2170 = vmatpush1.bf16.msra.mxu0 %v1513
    %2171 = vmatprep.subr.bf16.mxu0 %v1520
    %2172 = vmatpush1.bf16.msra.mxu0 %v1519
    %2173 = vmatprep.subr.bf16.mxu0 %v1526
    %2174 = vmatpush1.bf16.msra.mxu0 %v1525
    %2175 = vmatprep.subr.bf16.mxu0 %v1532
    %2176 = vmatpush1.bf16.msra.mxu0 %v1531
    %2177 = vmatprep.subr.bf16.mxu0 %v1538
    %2178 = vmatpush1.bf16.msra.mxu0 %v1537
    %2179 = vmatprep.subr.bf16.mxu0 %v1544
    %2180 = vmatpush1.bf16.msra.mxu0 %v1543
    %2181 = vmatprep.subr.bf16.mxu0 %v1550
    %2182 = vmatpush1.bf16.msra.mxu0 %v1549
    %2183 = vmatprep.subr.bf16.mxu0 %v1556
    %2184 = vmatpush1.bf16.msra.mxu0 %v1555
    %2185 = vmatprep.subr.bf16.mxu0 %v1562
    %2186 = vmatpush1.bf16.msra.mxu0 %v1561
    %2187 = vmatprep.subr.bf16.mxu0 %v1568
    %2188 = vmatpush1.bf16.msra.mxu0 %v1567
    %2189 = vmatprep.subr.bf16.mxu0 %v1574
    %2190 = vmatpush1.bf16.msra.mxu0 %v1573
    %2191 = vmatprep.subr.bf16.mxu0 %v1580
    %2192 = vmatpush1.bf16.msra.mxu0 %v1579
    %2193 = vmatprep.mubr.bf16.mxu0 %v454
    %2194 = vmatmul.mubr.bf16.gmra.mrb[0].mxu0 %v453
    %v2195 = vpop.f32.mrb[0].mxu0
    %v2196 = vadd.f32 0.0, %v2195
    %v2197 = vpop.f32.mrb[0].mxu0
    %v2198 = vadd.f32 0.0, %v2197
    %v2199 = vpop.f32.mrb[0].mxu0
    %v2200 = vadd.f32 0.0, %v2199
    %v2201 = vpop.f32.mrb[0].mxu0
    %v2202 = vadd.f32 0.0, %v2201
    %2203 = vmatprep.mubr.bf16.mxu0 %v461
    %2204 = vmatmul.mubr.bf16.gmra.mrb[0].mxu0 %v460
    %v2205 = vpop.f32.mrb[0].mxu0
    %v2206 = vadd.f32 0.0, %v2205
    %v2207 = vpop.f32.mrb[0].mxu0
    %v2208 = vadd.f32 0.0, %v2207
    %v2209 = vpop.f32.mrb[0].mxu0
    %v2210 = vadd.f32 0.0, %v2209
    %v2211 = vpop.f32.mrb[0].mxu0
    %v2212 = vadd.f32 0.0, %v2211
    %2213 = vdwg.mxu0
    %2214 = vmatprep.subr.bf16.mxu0 %v1586
    %2215 = vmatpush1.bf16.msra.mxu0 %v1585
    %2216 = vmatprep.subr.bf16.mxu0 %v1592
    %2217 = vmatpush1.bf16.msra.mxu0 %v1591
    %2218 = vmatprep.subr.bf16.mxu0 %v1598
    %2219 = vmatpush1.bf16.msra.mxu0 %v1597
    %2220 = vmatprep.subr.bf16.mxu0 %v1604
    %2221 = vmatpush1.bf16.msra.mxu0 %v1603
    %2222 = vmatprep.subr.bf16.mxu0 %v1610
    %2223 = vmatpush1.bf16.msra.mxu0 %v1609
    %2224 = vmatprep.subr.bf16.mxu0 %v1616
    %2225 = vmatpush1.bf16.msra.mxu0 %v1615
    %2226 = vmatprep.subr.bf16.mxu0 %v1622
    %2227 = vmatpush1.bf16.msra.mxu0 %v1621
    %2228 = vmatprep.subr.bf16.mxu0 %v1628
    %2229 = vmatpush1.bf16.msra.mxu0 %v1627
    %2230 = vmatprep.subr.bf16.mxu0 %v1634
    %2231 = vmatpush1.bf16.msra.mxu0 %v1633
    %2232 = vmatprep.subr.bf16.mxu0 %v1640
    %2233 = vmatpush1.bf16.msra.mxu0 %v1639
    %2234 = vmatprep.subr.bf16.mxu0 %v1646
    %2235 = vmatpush1.bf16.msra.mxu0 %v1645
    %2236 = vmatprep.subr.bf16.mxu0 %v1652
    %2237 = vmatpush1.bf16.msra.mxu0 %v1651
    %2238 = vmatprep.subr.bf16.mxu0 %v1658
    %2239 = vmatpush1.bf16.msra.mxu0 %v1657
    %2240 = vmatprep.subr.bf16.mxu0 %v1664
    %2241 = vmatpush1.bf16.msra.mxu0 %v1663
    %2242 = vmatprep.subr.bf16.mxu0 %v1670
    %2243 = vmatpush1.bf16.msra.mxu0 %v1669
    %2244 = vmatprep.subr.bf16.mxu0 %v1676
    %2245 = vmatpush1.bf16.msra.mxu0 %v1675
    %2246 = vmatprep.mubr.bf16.mxu0 %v456
    %2247 = vmatmul.mubr.bf16.gmra.mrb[0].mxu0 %v455
    %v2248 = vpop.f32.mrb[0].mxu0
    %v2249 = vadd.f32 %v2196, %v2248
    %v2250 = vpop.f32.mrb[0].mxu0
    %v2251 = vadd.f32 %v2198, %v2250
    %v2252 = vpop.f32.mrb[0].mxu0
    %v2253 = vadd.f32 %v2200, %v2252
    %v2254 = vpop.f32.mrb[0].mxu0
    %v2255 = vadd.f32 %v2202, %v2254
    %2256 = vmatprep.mubr.bf16.mxu0 %v463
    %2257 = vmatmul.mubr.bf16.gmra.mrb[0].mxu0 %v462
    %v2258 = vpop.f32.mrb[0].mxu0
    %v2259 = vadd.f32 %v2206, %v2258
    %v2260 = vpop.f32.mrb[0].mxu0
    %v2261 = vadd.f32 %v2208, %v2260
    %v2262 = vpop.f32.mrb[0].mxu0
    %v2263 = vadd.f32 %v2210, %v2262
    %v2264 = vpop.f32.mrb[0].mxu0
    %v2265 = vadd.f32 %v2212, %v2264
    %2266 = vdwg.mxu0
    %2267 = vmatprep.subr.bf16.mxu0 %v1682
    %2268 = vmatpush1.bf16.msra.mxu0 %v1681
    %2269 = vmatprep.subr.bf16.mxu0 %v1688
    %2270 = vmatpush1.bf16.msra.mxu0 %v1687
    %2271 = vmatprep.subr.bf16.mxu0 %v1694
    %2272 = vmatpush1.bf16.msra.mxu0 %v1693
    %2273 = vmatprep.subr.bf16.mxu0 %v1700
    %2274 = vmatpush1.bf16.msra.mxu0 %v1699
    %2275 = vmatprep.subr.bf16.mxu0 %v1706
    %2276 = vmatpush1.bf16.msra.mxu0 %v1705
    %2277 = vmatprep.subr.bf16.mxu0 %v1712
    %2278 = vmatpush1.bf16.msra.mxu0 %v1711
    %2279 = vmatprep.subr.bf16.mxu0 %v1718
    %2280 = vmatpush1.bf16.msra.mxu0 %v1717
    %2281 = vmatprep.subr.bf16.mxu0 %v1724
    %2282 = vmatpush1.bf16.msra.mxu0 %v1723
    %2283 = vmatprep.subr.bf16.mxu0 %v1730
    %2284 = vmatpush1.bf16.msra.mxu0 %v1729
    %2285 = vmatprep.subr.bf16.mxu0 %v1736
    %2286 = vmatpush1.bf16.msra.mxu0 %v1735
    %2287 = vmatprep.subr.bf16.mxu0 %v1742
    %2288 = vmatpush1.bf16.msra.mxu0 %v1741
    %2289 = vmatprep.subr.bf16.mxu0 %v1748
    %2290 = vmatpush1.bf16.msra.mxu0 %v1747
    %2291 = vmatprep.subr.bf16.mxu0 %v1754
    %2292 = vmatpush1.bf16.msra.mxu0 %v1753
    %2293 = vmatprep.subr.bf16.mxu0 %v1760
    %2294 = vmatpush1.bf16.msra.mxu0 %v1759
    %2295 = vmatprep.subr.bf16.mxu0 %v1766
    %2296 = vmatpush1.bf16.msra.mxu0 %v1765
    %2297 = vmatprep.subr.bf16.mxu0 %v1772
    %2298 = vmatpush1.bf16.msra.mxu0 %v1771
    %2299 = vmatprep.mubr.bf16.mxu0 %v458
    %2300 = vmatmul.mubr.bf16.gmra.mrb[0].mxu0 %v457
    %v2301 = vpop.f32.mrb[0].mxu0
    %v2302 = vadd.f32 %v2249, %v2301
    %v2303 = vpop.f32.mrb[0].mxu0
    %v2304 = vadd.f32 %v2251, %v2303
    %v2305 = vpop.f32.mrb[0].mxu0
    %v2306 = vadd.f32 %v2253, %v2305
    %v2307 = vpop.f32.mrb[0].mxu0
    %v2308 = vadd.f32 %v2255, %v2307
    %2309 = vmatprep.mubr.bf16.mxu0 %v465
    %2310 = vmatmul.mubr.bf16.gmra.mrb[0].mxu0 %v464
    %v2311 = vpop.f32.mrb[0].mxu0
    %v2312 = vadd.f32 %v2259, %v2311
    %v2313 = vpop.f32.mrb[0].mxu0
    %v2314 = vadd.f32 %v2261, %v2313
    %v2315 = vpop.f32.mrb[0].mxu0
    %v2316 = vadd.f32 %v2263, %v2315
    %v2317 = vpop.f32.mrb[0].mxu0
    %v2318 = vadd.f32 %v2265, %v2317
    %2319 = vdwg.mxu0
    %2320 = vmatprep.subr.bf16.mxu0 %v1778
    %2321 = vmatpush1.bf16.msra.mxu0 %v1777
    %2322 = vmatprep.subr.bf16.mxu0 %v1784
    %2323 = vmatpush1.bf16.msra.mxu0 %v1783
    %2324 = vmatprep.subr.bf16.mxu0 %v1790
    %2325 = vmatpush1.bf16.msra.mxu0 %v1789
    %2326 = vmatprep.subr.bf16.mxu0 %v1796
    %2327 = vmatpush1.bf16.msra.mxu0 %v1795
    %2328 = vmatprep.subr.bf16.mxu0 %v1802
    %2329 = vmatpush1.bf16.msra.mxu0 %v1801
    %2330 = vmatprep.subr.bf16.mxu0 %v1808
    %2331 = vmatpush1.bf16.msra.mxu0 %v1807
    %2332 = vmatprep.subr.bf16.mxu0 %v1814
    %2333 = vmatpush1.bf16.msra.mxu0 %v1813
    %2334 = vmatprep.subr.bf16.mxu0 %v1820
    %2335 = vmatpush1.bf16.msra.mxu0 %v1819
    %2336 = vmatprep.subr.bf16.mxu0 0
    %2337 = vmatpush1.bf16.msra.mxu0 0
    %2338 = vmatprep.subr.bf16.mxu0 0
    %2339 = vmatpush1.bf16.msra.mxu0 0
    %2340 = vmatprep.subr.bf16.mxu0 0
    %2341 = vmatpush1.bf16.msra.mxu0 0
    %2342 = vmatprep.subr.bf16.mxu0 0
    %2343 = vmatpush1.bf16.msra.mxu0 0
    %2344 = vmatprep.subr.bf16.mxu0 0
    %2345 = vmatpush1.bf16.msra.mxu0 0
    %2346 = vmatprep.subr.bf16.mxu0 0
    %2347 = vmatpush1.bf16.msra.mxu0 0
    %2348 = vmatprep.subr.bf16.mxu0 0
    %2349 = vmatpush1.bf16.msra.mxu0 0
    %2350 = vmatprep.subr.bf16.mxu0 0
    %2351 = vmatpush1.bf16.msra.mxu0 0
    %2352 = vmatprep.mubr.bf16.mxu0 0
    %2353 = vmatmul.mubr.bf16.gmra.mrb[0].mxu0 %v459
    %v2354 = vpop.f32.mrb[0].mxu0
    %v2355 = vadd.f32 %v2302, %v2354
    %v2356 = vpop.f32.mrb[0].mxu0
    %v2357 = vadd.f32 %v2304, %v2356
    %v2358 = vpop.f32.mrb[0].mxu0
    %v2359 = vadd.f32 %v2306, %v2358
    %v2360 = vpop.f32.mrb[0].mxu0
    %v2361 = vadd.f32 %v2308, %v2360
    %2362 = vmatprep.mubr.bf16.mxu0 0
    %2363 = vmatmul.mubr.bf16.gmra.mrb[0].mxu0 %v466
    %v2364 = vpop.f32.mrb[0].mxu0
    %v2365 = vadd.f32 %v2312, %v2364
    %v2366 = vpop.f32.mrb[0].mxu0
    %v2367 = vadd.f32 %v2314, %v2366
    %v2368 = vpop.f32.mrb[0].mxu0
    %v2369 = vadd.f32 %v2316, %v2368
    %v2370 = vpop.f32.mrb[0].mxu0
    %v2371 = vadd.f32 %v2318, %v2370
    %2372 = vdwg.mxu0
    %2373 = vmatprep.subr.bf16.mxu0 %v1492
    %2374 = vmatpush1.bf16.msra.mxu0 %v1491
    %2375 = vmatprep.subr.bf16.mxu0 %v1498
    %2376 = vmatpush1.bf16.msra.mxu0 %v1497
    %2377 = vmatprep.subr.bf16.mxu0 %v1504
    %2378 = vmatpush1.bf16.msra.mxu0 %v1503
    %2379 = vmatprep.subr.bf16.mxu0 %v1510
    %2380 = vmatpush1.bf16.msra.mxu0 %v1509
    %2381 = vmatprep.subr.bf16.mxu0 %v1516
    %2382 = vmatpush1.bf16.msra.mxu0 %v1515
    %2383 = vmatprep.subr.bf16.mxu0 %v1522
    %2384 = vmatpush1.bf16.msra.mxu0 %v1521
    %2385 = vmatprep.subr.bf16.mxu0 %v1528
    %2386 = vmatpush1.bf16.msra.mxu0 %v1527
    %2387 = vmatprep.subr.bf16.mxu0 %v1534
    %2388 = vmatpush1.bf16.msra.mxu0 %v1533
    %2389 = vmatprep.subr.bf16.mxu0 %v1540
    %2390 = vmatpush1.bf16.msra.mxu0 %v1539
    %2391 = vmatprep.subr.bf16.mxu0 %v1546
    %2392 = vmatpush1.bf16.msra.mxu0 %v1545
    %2393 = vmatprep.subr.bf16.mxu0 %v1552
    %2394 = vmatpush1.bf16.msra.mxu0 %v1551
    %2395 = vmatprep.subr.bf16.mxu0 %v1558
    %2396 = vmatpush1.bf16.msra.mxu0 %v1557
    %2397 = vmatprep.subr.bf16.mxu0 %v1564
    %2398 = vmatpush1.bf16.msra.mxu0 %v1563
    %2399 = vmatprep.subr.bf16.mxu0 %v1570
    %2400 = vmatpush1.bf16.msra.mxu0 %v1569
    %2401 = vmatprep.subr.bf16.mxu0 %v1576
    %2402 = vmatpush1.bf16.msra.mxu0 %v1575
    %2403 = vmatprep.subr.bf16.mxu0 %v1582
    %2404 = vmatpush1.bf16.msra.mxu0 %v1581
    %2405 = vmatprep.mubr.bf16.mxu0 %v454
    %2406 = vmatmul.mubr.bf16.gmra.mrb[0].mxu0 %v453
    %v2407 = vpop.f32.mrb[0].mxu0
    %v2408 = vadd.f32 0.0, %v2407
    %v2409 = vpop.f32.mrb[0].mxu0
    %v2410 = vadd.f32 0.0, %v2409
    %v2411 = vpop.f32.mrb[0].mxu0
    %v2412 = vadd.f32 0.0, %v2411
    %v2413 = vpop.f32.mrb[0].mxu0
    %v2414 = vadd.f32 0.0, %v2413
    %2415 = vmatprep.mubr.bf16.mxu0 %v461
    %2416 = vmatmul.mubr.bf16.gmra.mrb[0].mxu0 %v460
    %v2417 = vpop.f32.mrb[0].mxu0
    %v2418 = vadd.f32 0.0, %v2417
    %v2419 = vpop.f32.mrb[0].mxu0
    %v2420 = vadd.f32 0.0, %v2419
    %v2421 = vpop.f32.mrb[0].mxu0
    %v2422 = vadd.f32 0.0, %v2421
    %v2423 = vpop.f32.mrb[0].mxu0
    %v2424 = vadd.f32 0.0, %v2423
    %2425 = vdwg.mxu0
    %2426 = vmatprep.subr.bf16.mxu0 %v1588
    %2427 = vmatpush1.bf16.msra.mxu0 %v1587
    %2428 = vmatprep.subr.bf16.mxu0 %v1594
    %2429 = vmatpush1.bf16.msra.mxu0 %v1593
    %2430 = vmatprep.subr.bf16.mxu0 %v1600
    %2431 = vmatpush1.bf16.msra.mxu0 %v1599
    %2432 = vmatprep.subr.bf16.mxu0 %v1606
    %2433 = vmatpush1.bf16.msra.mxu0 %v1605
    %2434 = vmatprep.subr.bf16.mxu0 %v1612
    %2435 = vmatpush1.bf16.msra.mxu0 %v1611
    %2436 = vmatprep.subr.bf16.mxu0 %v1618
    %2437 = vmatpush1.bf16.msra.mxu0 %v1617
    %2438 = vmatprep.subr.bf16.mxu0 %v1624
    %2439 = vmatpush1.bf16.msra.mxu0 %v1623
    %2440 = vmatprep.subr.bf16.mxu0 %v1630
    %2441 = vmatpush1.bf16.msra.mxu0 %v1629
    %2442 = vmatprep.subr.bf16.mxu0 %v1636
    %2443 = vmatpush1.bf16.msra.mxu0 %v1635
    %2444 = vmatprep.subr.bf16.mxu0 %v1642
    %2445 = vmatpush1.bf16.msra.mxu0 %v1641
    %2446 = vmatprep.subr.bf16.mxu0 %v1648
    %2447 = vmatpush1.bf16.msra.mxu0 %v1647
    %2448 = vmatprep.subr.bf16.mxu0 %v1654
    %2449 = vmatpush1.bf16.msra.mxu0 %v1653
    %2450 = vmatprep.subr.bf16.mxu0 %v1660
    %2451 = vmatpush1.bf16.msra.mxu0 %v1659
    %2452 = vmatprep.subr.bf16.mxu0 %v1666
    %2453 = vmatpush1.bf16.msra.mxu0 %v1665
    %2454 = vmatprep.subr.bf16.mxu0 %v1672
    %2455 = vmatpush1.bf16.msra.mxu0 %v1671
    %2456 = vmatprep.subr.bf16.mxu0 %v1678
    %2457 = vmatpush1.bf16.msra.mxu0 %v1677
    %2458 = vmatprep.mubr.bf16.mxu0 %v456
    %2459 = vmatmul.mubr.bf16.gmra.mrb[0].mxu0 %v455
    %v2460 = vpop.f32.mrb[0].mxu0
    %v2461 = vadd.f32 %v2408, %v2460
    %v2462 = vpop.f32.mrb[0].mxu0
    %v2463 = vadd.f32 %v2410, %v2462
    %v2464 = vpop.f32.mrb[0].mxu0
    %v2465 = vadd.f32 %v2412, %v2464
    %v2466 = vpop.f32.mrb[0].mxu0
    %v2467 = vadd.f32 %v2414, %v2466
    %2468 = vmatprep.mubr.bf16.mxu0 %v463
    %2469 = vmatmul.mubr.bf16.gmra.mrb[0].mxu0 %v462
    %v2470 = vpop.f32.mrb[0].mxu0
    %v2471 = vadd.f32 %v2418, %v2470
    %v2472 = vpop.f32.mrb[0].mxu0
    %v2473 = vadd.f32 %v2420, %v2472
    %v2474 = vpop.f32.mrb[0].mxu0
    %v2475 = vadd.f32 %v2422, %v2474
    %v2476 = vpop.f32.mrb[0].mxu0
    %v2477 = vadd.f32 %v2424, %v2476
    %2478 = vdwg.mxu0
    %2479 = vmatprep.subr.bf16.mxu0 %v1684
    %2480 = vmatpush1.bf16.msra.mxu0 %v1683
    %2481 = vmatprep.subr.bf16.mxu0 %v1690
    %2482 = vmatpush1.bf16.msra.mxu0 %v1689
    %2483 = vmatprep.subr.bf16.mxu0 %v1696
    %2484 = vmatpush1.bf16.msra.mxu0 %v1695
    %2485 = vmatprep.subr.bf16.mxu0 %v1702
    %2486 = vmatpush1.bf16.msra.mxu0 %v1701
    %2487 = vmatprep.subr.bf16.mxu0 %v1708
    %2488 = vmatpush1.bf16.msra.mxu0 %v1707
    %2489 = vmatprep.subr.bf16.mxu0 %v1714
    %2490 = vmatpush1.bf16.msra.mxu0 %v1713
    %2491 = vmatprep.subr.bf16.mxu0 %v1720
    %2492 = vmatpush1.bf16.msra.mxu0 %v1719
    %2493 = vmatprep.subr.bf16.mxu0 %v1726
    %2494 = vmatpush1.bf16.msra.mxu0 %v1725
    %2495 = vmatprep.subr.bf16.mxu0 %v1732
    %2496 = vmatpush1.bf16.msra.mxu0 %v1731
    %2497 = vmatprep.subr.bf16.mxu0 %v1738
    %2498 = vmatpush1.bf16.msra.mxu0 %v1737
    %2499 = vmatprep.subr.bf16.mxu0 %v1744
    %2500 = vmatpush1.bf16.msra.mxu0 %v1743
    %2501 = vmatprep.subr.bf16.mxu0 %v1750
    %2502 = vmatpush1.bf16.msra.mxu0 %v1749
    %2503 = vmatprep.subr.bf16.mxu0 %v1756
    %2504 = vmatpush1.bf16.msra.mxu0 %v1755
    %2505 = vmatprep.subr.bf16.mxu0 %v1762
    %2506 = vmatpush1.bf16.msra.mxu0 %v1761
    %2507 = vmatprep.subr.bf16.mxu0 %v1768
    %2508 = vmatpush1.bf16.msra.mxu0 %v1767
    %2509 = vmatprep.subr.bf16.mxu0 %v1774
    %2510 = vmatpush1.bf16.msra.mxu0 %v1773
    %2511 = vmatprep.mubr.bf16.mxu0 %v458
    %2512 = vmatmul.mubr.bf16.gmra.mrb[0].mxu0 %v457
    %v2513 = vpop.f32.mrb[0].mxu0
    %v2514 = vadd.f32 %v2461, %v2513
    %v2515 = vpop.f32.mrb[0].mxu0
    %v2516 = vadd.f32 %v2463, %v2515
    %v2517 = vpop.f32.mrb[0].mxu0
    %v2518 = vadd.f32 %v2465, %v2517
    %v2519 = vpop.f32.mrb[0].mxu0
    %v2520 = vadd.f32 %v2467, %v2519
    %2521 = vmatprep.mubr.bf16.mxu0 %v465
    %2522 = vmatmul.mubr.bf16.gmra.mrb[0].mxu0 %v464
    %v2523 = vpop.f32.mrb[0].mxu0
    %v2524 = vadd.f32 %v2471, %v2523
    %v2525 = vpop.f32.mrb[0].mxu0
    %v2526 = vadd.f32 %v2473, %v2525
    %v2527 = vpop.f32.mrb[0].mxu0
    %v2528 = vadd.f32 %v2475, %v2527
    %v2529 = vpop.f32.mrb[0].mxu0
    %v2530 = vadd.f32 %v2477, %v2529
    %2531 = vdwg.mxu0
    %2532 = vmatprep.subr.bf16.mxu0 %v1780
    %2533 = vmatpush1.bf16.msra.mxu0 %v1779
    %2534 = vmatprep.subr.bf16.mxu0 %v1786
    %2535 = vmatpush1.bf16.msra.mxu0 %v1785
    %2536 = vmatprep.subr.bf16.mxu0 %v1792
    %2537 = vmatpush1.bf16.msra.mxu0 %v1791
    %2538 = vmatprep.subr.bf16.mxu0 %v1798
    %2539 = vmatpush1.bf16.msra.mxu0 %v1797
    %2540 = vmatprep.subr.bf16.mxu0 %v1804
    %2541 = vmatpush1.bf16.msra.mxu0 %v1803
    %2542 = vmatprep.subr.bf16.mxu0 %v1810
    %2543 = vmatpush1.bf16.msra.mxu0 %v1809
    %2544 = vmatprep.subr.bf16.mxu0 %v1816
    %2545 = vmatpush1.bf16.msra.mxu0 %v1815
    %2546 = vmatprep.subr.bf16.mxu0 %v1822
    %2547 = vmatpush1.bf16.msra.mxu0 %v1821
    %2548 = vmatprep.subr.bf16.mxu0 0
    %2549 = vmatpush1.bf16.msra.mxu0 0
    %2550 = vmatprep.subr.bf16.mxu0 0
    %2551 = vmatpush1.bf16.msra.mxu0 0
    %2552 = vmatprep.subr.bf16.mxu0 0
    %2553 = vmatpush1.bf16.msra.mxu0 0
    %2554 = vmatprep.subr.bf16.mxu0 0
    %2555 = vmatpush1.bf16.msra.mxu0 0
    %2556 = vmatprep.subr.bf16.mxu0 0
    %2557 = vmatpush1.bf16.msra.mxu0 0
    %2558 = vmatprep.subr.bf16.mxu0 0
    %2559 = vmatpush1.bf16.msra.mxu0 0
    %2560 = vmatprep.subr.bf16.mxu0 0
    %2561 = vmatpush1.bf16.msra.mxu0 0
    %2562 = vmatprep.subr.bf16.mxu0 0
    %2563 = vmatpush1.bf16.msra.mxu0 0
    %2564 = vmatprep.mubr.bf16.mxu0 0
    %2565 = vmatmul.mubr.bf16.gmra.mrb[0].mxu0 %v459
    %v2566 = vpop.f32.mrb[0].mxu0
    %v2567 = vadd.f32 %v2514, %v2566
    %v2568 = vpop.f32.mrb[0].mxu0
    %v2569 = vadd.f32 %v2516, %v2568
    %v2570 = vpop.f32.mrb[0].mxu0
    %v2571 = vadd.f32 %v2518, %v2570
    %v2572 = vpop.f32.mrb[0].mxu0
    %v2573 = vadd.f32 %v2520, %v2572
    %2574 = vmatprep.mubr.bf16.mxu0 0
    %2575 = vmatmul.mubr.bf16.gmra.mrb[0].mxu0 %v466
    %v2576 = vpop.f32.mrb[0].mxu0
    %v2577 = vadd.f32 %v2524, %v2576
    %v2578 = vpop.f32.mrb[0].mxu0
    %v2579 = vadd.f32 %v2526, %v2578
    %v2580 = vpop.f32.mrb[0].mxu0
    %v2581 = vadd.f32 %v2528, %v2580
    %v2582 = vpop.f32.mrb[0].mxu0
    %v2583 = vadd.f32 %v2530, %v2582
    %2584 = vdwg.mxu0
    %2585 = vmatprep.subr.bf16.mxu0 %v1494
    %2586 = vmatpush1.bf16.msra.mxu0 %v1493
    %2587 = vmatprep.subr.bf16.mxu0 %v1500
    %2588 = vmatpush1.bf16.msra.mxu0 %v1499
    %2589 = vmatprep.subr.bf16.mxu0 %v1506
    %2590 = vmatpush1.bf16.msra.mxu0 %v1505
    %2591 = vmatprep.subr.bf16.mxu0 %v1512
    %2592 = vmatpush1.bf16.msra.mxu0 %v1511
    %2593 = vmatprep.subr.bf16.mxu0 %v1518
    %2594 = vmatpush1.bf16.msra.mxu0 %v1517
    %2595 = vmatprep.subr.bf16.mxu0 %v1524
    %2596 = vmatpush1.bf16.msra.mxu0 %v1523
    %2597 = vmatprep.subr.bf16.mxu0 %v1530
    %2598 = vmatpush1.bf16.msra.mxu0 %v1529
    %2599 = vmatprep.subr.bf16.mxu0 %v1536
    %2600 = vmatpush1.bf16.msra.mxu0 %v1535
    %2601 = vmatprep.subr.bf16.mxu0 %v1542
    %2602 = vmatpush1.bf16.msra.mxu0 %v1541
    %2603 = vmatprep.subr.bf16.mxu0 %v1548
    %2604 = vmatpush1.bf16.msra.mxu0 %v1547
    %2605 = vmatprep.subr.bf16.mxu0 %v1554
    %2606 = vmatpush1.bf16.msra.mxu0 %v1553
    %2607 = vmatprep.subr.bf16.mxu0 %v1560
    %2608 = vmatpush1.bf16.msra.mxu0 %v1559
    %2609 = vmatprep.subr.bf16.mxu0 %v1566
    %2610 = vmatpush1.bf16.msra.mxu0 %v1565
    %2611 = vmatprep.subr.bf16.mxu0 %v1572
    %2612 = vmatpush1.bf16.msra.mxu0 %v1571
    %2613 = vmatprep.subr.bf16.mxu0 %v1578
    %2614 = vmatpush1.bf16.msra.mxu0 %v1577
    %2615 = vmatprep.subr.bf16.mxu0 %v1584
    %2616 = vmatpush1.bf16.msra.mxu0 %v1583
    %2617 = vmatprep.mubr.bf16.mxu0 %v454
    %2618 = vmatmul.mubr.bf16.gmra.mrb[0].mxu0 %v453
    %v2619 = vpop.f32.mrb[0].mxu0
    %v2620 = vadd.f32 0.0, %v2619
    %v2621 = vpop.f32.mrb[0].mxu0
    %v2622 = vadd.f32 0.0, %v2621
    %v2623 = vpop.f32.mrb[0].mxu0
    %v2624 = vadd.f32 0.0, %v2623
    %v2625 = vpop.f32.mrb[0].mxu0
    %v2626 = vadd.f32 0.0, %v2625
    %2627 = vmatprep.mubr.bf16.mxu0 %v461
    %2628 = vmatmul.mubr.bf16.gmra.mrb[0].mxu0 %v460
    %v2629 = vpop.f32.mrb[0].mxu0
    %v2630 = vadd.f32 0.0, %v2629
    %v2631 = vpop.f32.mrb[0].mxu0
    %v2632 = vadd.f32 0.0, %v2631
    %v2633 = vpop.f32.mrb[0].mxu0
    %v2634 = vadd.f32 0.0, %v2633
    %v2635 = vpop.f32.mrb[0].mxu0
    %v2636 = vadd.f32 0.0, %v2635
    %2637 = vdwg.mxu0
    %2638 = vmatprep.subr.bf16.mxu0 %v1590
    %2639 = vmatpush1.bf16.msra.mxu0 %v1589
    %2640 = vmatprep.subr.bf16.mxu0 %v1596
    %2641 = vmatpush1.bf16.msra.mxu0 %v1595
    %2642 = vmatprep.subr.bf16.mxu0 %v1602
    %2643 = vmatpush1.bf16.msra.mxu0 %v1601
    %2644 = vmatprep.subr.bf16.mxu0 %v1608
    %2645 = vmatpush1.bf16.msra.mxu0 %v1607
    %2646 = vmatprep.subr.bf16.mxu0 %v1614
    %2647 = vmatpush1.bf16.msra.mxu0 %v1613
    %2648 = vmatprep.subr.bf16.mxu0 %v1620
    %2649 = vmatpush1.bf16.msra.mxu0 %v1619
    %2650 = vmatprep.subr.bf16.mxu0 %v1626
    %2651 = vmatpush1.bf16.msra.mxu0 %v1625
    %2652 = vmatprep.subr.bf16.mxu0 %v1632
    %2653 = vmatpush1.bf16.msra.mxu0 %v1631
    %2654 = vmatprep.subr.bf16.mxu0 %v1638
    %2655 = vmatpush1.bf16.msra.mxu0 %v1637
    %2656 = vmatprep.subr.bf16.mxu0 %v1644
    %2657 = vmatpush1.bf16.msra.mxu0 %v1643
    %2658 = vmatprep.subr.bf16.mxu0 %v1650
    %2659 = vmatpush1.bf16.msra.mxu0 %v1649
    %2660 = vmatprep.subr.bf16.mxu0 %v1656
    %2661 = vmatpush1.bf16.msra.mxu0 %v1655
    %2662 = vmatprep.subr.bf16.mxu0 %v1662
    %2663 = vmatpush1.bf16.msra.mxu0 %v1661
    %2664 = vmatprep.subr.bf16.mxu0 %v1668
    %2665 = vmatpush1.bf16.msra.mxu0 %v1667
    %2666 = vmatprep.subr.bf16.mxu0 %v1674
    %2667 = vmatpush1.bf16.msra.mxu0 %v1673
    %2668 = vmatprep.subr.bf16.mxu0 %v1680
    %2669 = vmatpush1.bf16.msra.mxu0 %v1679
    %2670 = vmatprep.mubr.bf16.mxu0 %v456
    %2671 = vmatmul.mubr.bf16.gmra.mrb[0].mxu0 %v455
    %v2672 = vpop.f32.mrb[0].mxu0
    %v2673 = vadd.f32 %v2620, %v2672
    %v2674 = vpop.f32.mrb[0].mxu0
    %v2675 = vadd.f32 %v2622, %v2674
    %v2676 = vpop.f32.mrb[0].mxu0
    %v2677 = vadd.f32 %v2624, %v2676
    %v2678 = vpop.f32.mrb[0].mxu0
    %v2679 = vadd.f32 %v2626, %v2678
    %2680 = vmatprep.mubr.bf16.mxu0 %v463
    %2681 = vmatmul.mubr.bf16.gmra.mrb[0].mxu0 %v462
    %v2682 = vpop.f32.mrb[0].mxu0
    %v2683 = vadd.f32 %v2630, %v2682
    %v2684 = vpop.f32.mrb[0].mxu0
    %v2685 = vadd.f32 %v2632, %v2684
    %v2686 = vpop.f32.mrb[0].mxu0
    %v2687 = vadd.f32 %v2634, %v2686
    %v2688 = vpop.f32.mrb[0].mxu0
    %v2689 = vadd.f32 %v2636, %v2688
    %2690 = vdwg.mxu0
    %2691 = vmatprep.subr.bf16.mxu0 %v1686
    %2692 = vmatpush1.bf16.msra.mxu0 %v1685
    %2693 = vmatprep.subr.bf16.mxu0 %v1692
    %2694 = vmatpush1.bf16.msra.mxu0 %v1691
    %2695 = vmatprep.subr.bf16.mxu0 %v1698
    %2696 = vmatpush1.bf16.msra.mxu0 %v1697
    %2697 = vmatprep.subr.bf16.mxu0 %v1704
    %2698 = vmatpush1.bf16.msra.mxu0 %v1703
    %2699 = vmatprep.subr.bf16.mxu0 %v1710
    %2700 = vmatpush1.bf16.msra.mxu0 %v1709
    %2701 = vmatprep.subr.bf16.mxu0 %v1716
    %2702 = vmatpush1.bf16.msra.mxu0 %v1715
    %2703 = vmatprep.subr.bf16.mxu0 %v1722
    %2704 = vmatpush1.bf16.msra.mxu0 %v1721
    %2705 = vmatprep.subr.bf16.mxu0 %v1728
    %2706 = vmatpush1.bf16.msra.mxu0 %v1727
    %2707 = vmatprep.subr.bf16.mxu0 %v1734
    %2708 = vmatpush1.bf16.msra.mxu0 %v1733
    %2709 = vmatprep.subr.bf16.mxu0 %v1740
    %2710 = vmatpush1.bf16.msra.mxu0 %v1739
    %2711 = vmatprep.subr.bf16.mxu0 %v1746
    %2712 = vmatpush1.bf16.msra.mxu0 %v1745
    %2713 = vmatprep.subr.bf16.mxu0 %v1752
    %2714 = vmatpush1.bf16.msra.mxu0 %v1751
    %2715 = vmatprep.subr.bf16.mxu0 %v1758
    %2716 = vmatpush1.bf16.msra.mxu0 %v1757
    %2717 = vmatprep.subr.bf16.mxu0 %v1764
    %2718 = vmatpush1.bf16.msra.mxu0 %v1763
    %2719 = vmatprep.subr.bf16.mxu0 %v1770
    %2720 = vmatpush1.bf16.msra.mxu0 %v1769
    %2721 = vmatprep.subr.bf16.mxu0 %v1776
    %2722 = vmatpush1.bf16.msra.mxu0 %v1775
    %2723 = vmatprep.mubr.bf16.mxu0 %v458
    %2724 = vmatmul.mubr.bf16.gmra.mrb[0].mxu0 %v457
    %v2725 = vpop.f32.mrb[0].mxu0
    %v2726 = vadd.f32 %v2673, %v2725
    %v2727 = vpop.f32.mrb[0].mxu0
    %v2728 = vadd.f32 %v2675, %v2727
    %v2729 = vpop.f32.mrb[0].mxu0
    %v2730 = vadd.f32 %v2677, %v2729
    %v2731 = vpop.f32.mrb[0].mxu0
    %v2732 = vadd.f32 %v2679, %v2731
    %2733 = vmatprep.mubr.bf16.mxu0 %v465
    %2734 = vmatmul.mubr.bf16.gmra.mrb[0].mxu0 %v464
    %v2735 = vpop.f32.mrb[0].mxu0
    %v2736 = vadd.f32 %v2683, %v2735
    %v2737 = vpop.f32.mrb[0].mxu0
    %v2738 = vadd.f32 %v2685, %v2737
    %v2739 = vpop.f32.mrb[0].mxu0
    %v2740 = vadd.f32 %v2687, %v2739
    %v2741 = vpop.f32.mrb[0].mxu0
    %v2742 = vadd.f32 %v2689, %v2741
    %2743 = vdwg.mxu0
    %2744 = vmatprep.subr.bf16.mxu0 %v1782
    %2745 = vmatpush1.bf16.msra.mxu0 %v1781
    %2746 = vmatprep.subr.bf16.mxu0 %v1788
    %2747 = vmatpush1.bf16.msra.mxu0 %v1787
    %2748 = vmatprep.subr.bf16.mxu0 %v1794
    %2749 = vmatpush1.bf16.msra.mxu0 %v1793
    %2750 = vmatprep.subr.bf16.mxu0 %v1800
    %2751 = vmatpush1.bf16.msra.mxu0 %v1799
    %2752 = vmatprep.subr.bf16.mxu0 %v1806
    %2753 = vmatpush1.bf16.msra.mxu0 %v1805
    %2754 = vmatprep.subr.bf16.mxu0 %v1812
    %2755 = vmatpush1.bf16.msra.mxu0 %v1811
    %2756 = vmatprep.subr.bf16.mxu0 %v1818
    %2757 = vmatpush1.bf16.msra.mxu0 %v1817
    %2758 = vmatprep.subr.bf16.mxu0 %v1824
    %2759 = vmatpush1.bf16.msra.mxu0 %v1823
    %2760 = vmatprep.subr.bf16.mxu0 0
    %2761 = vmatpush1.bf16.msra.mxu0 0
    %2762 = vmatprep.subr.bf16.mxu0 0
    %2763 = vmatpush1.bf16.msra.mxu0 0
    %2764 = vmatprep.subr.bf16.mxu0 0
    %2765 = vmatpush1.bf16.msra.mxu0 0
    %2766 = vmatprep.subr.bf16.mxu0 0
    %2767 = vmatpush1.bf16.msra.mxu0 0
    %2768 = vmatprep.subr.bf16.mxu0 0
    %2769 = vmatpush1.bf16.msra.mxu0 0
    %2770 = vmatprep.subr.bf16.mxu0 0
    %2771 = vmatpush1.bf16.msra.mxu0 0
    %2772 = vmatprep.subr.bf16.mxu0 0
    %2773 = vmatpush1.bf16.msra.mxu0 0
    %2774 = vmatprep.subr.bf16.mxu0 0
    %2775 = vmatpush1.bf16.msra.mxu0 0
    %2776 = vmatprep.mubr.bf16.mxu0 0
    %2777 = vmatmul.mubr.bf16.gmra.mrb[0].mxu0 %v459
    %v2778 = vpop.f32.mrb[0].mxu0
    %v2779 = vadd.f32 %v2726, %v2778
    %v2780 = vpop.f32.mrb[0].mxu0
    %v2781 = vadd.f32 %v2728, %v2780
    %v2782 = vpop.f32.mrb[0].mxu0
    %v2783 = vadd.f32 %v2730, %v2782
    %v2784 = vpop.f32.mrb[0].mxu0
    %v2785 = vadd.f32 %v2732, %v2784
    %2786 = vmatprep.mubr.bf16.mxu0 0
    %2787 = vmatmul.mubr.bf16.gmra.mrb[0].mxu0 %v466
    %v2788 = vpop.f32.mrb[0].mxu0
    %v2789 = vadd.f32 %v2736, %v2788
    %v2790 = vpop.f32.mrb[0].mxu0
    %v2791 = vadd.f32 %v2738, %v2790
    %v2792 = vpop.f32.mrb[0].mxu0
    %v2793 = vadd.f32 %v2740, %v2792
    %v2794 = vpop.f32.mrb[0].mxu0
    %v2795 = vadd.f32 %v2742, %v2794
    %2796 = vdwg.mxu0
    %v2797 = vmul.f32 %v2355, %v2355
    %v2798 = vmul.f32 %v2357, %v2357
    %v2799 = vmul.f32 %v2567, %v2567
    %v2800 = vmul.f32 %v2359, %v2359
    %v2801 = vmul.f32 %v2361, %v2361
    %v2802 = vmul.f32 %v2571, %v2571
    %v2803 = vmul.f32 %v2365, %v2365
    %v2804 = vmul.f32 %v2367, %v2367
    %v2805 = vmul.f32 %v2577, %v2577
    %v2806 = vmul.f32 %v2369, %v2369
    %v2807 = vmul.f32 %v2371, %v2371
    %v2808 = vmul.f32 %v2581, %v2581
    %v2809 = vmul.f32 %v2569, %v2569
    %v2810 = vmul.f32 %v2779, %v2779
    %v2811 = vmul.f32 %v2781, %v2781
    %v2812 = vmul.f32 %v2573, %v2573
    %v2813 = vmul.f32 %v2783, %v2783
    %v2814 = vmul.f32 %v2785, %v2785
    %v2815 = vmul.f32 %v2579, %v2579
    %v2816 = vmul.f32 %v2789, %v2789
    %v2817 = vmul.f32 %v2791, %v2791
    %v2818 = vmul.f32 %v2583, %v2583
    %v2819 = vmul.f32 %v2793, %v2793
    %v2820 = vmul.f32 %v2795, %v2795
    %v2821 = vadd.f32 %v2797, %v2809
    %v2822 = vadd.f32 %v2798, %v2810
    %v2823 = vadd.f32 %v2799, %v2811
    %v2824 = vadd.f32 %v2800, %v2812
    %v2825 = vadd.f32 %v2801, %v2813
    %v2826 = vadd.f32 %v2802, %v2814
    %v2827 = vadd.f32 %v2803, %v2815
    %v2828 = vadd.f32 %v2804, %v2816
    %v2829 = vadd.f32 %v2805, %v2817
    %v2830 = vadd.f32 %v2806, %v2818
    %v2831 = vadd.f32 %v2807, %v2819
    %v2832 = vadd.f32 %v2808, %v2820
    %v2833 = vrsqrt.pop %v2821
    %v2834 = vmul.f32 %v2821, %v2833
    %vm2835 = vcmp.eq.f32.partialorder %v2821, inf
    %v2836 = vsel %vm2835, %v2821, %v2834
    %vm2837 = vcmp.eq.f32.partialorder %v2821, 0.0
    %v2838 = vand.u32 %v2821, 2147483648
    %v2839 = vsel %vm2837, %v2838, %v2836
    %v2840 = vrsqrt.pop %v2822
    %v2841 = vmul.f32 %v2822, %v2840
    %vm2842 = vcmp.eq.f32.partialorder %v2822, inf
    %v2843 = vsel %vm2842, %v2822, %v2841
    %vm2844 = vcmp.eq.f32.partialorder %v2822, 0.0
    %v2845 = vand.u32 %v2822, 2147483648
    %v2846 = vsel %vm2844, %v2845, %v2843
    %v2847 = vrsqrt.pop %v2823
    %v2848 = vmul.f32 %v2823, %v2847
    %vm2849 = vcmp.eq.f32.partialorder %v2823, inf
    %v2850 = vsel %vm2849, %v2823, %v2848
    %vm2851 = vcmp.eq.f32.partialorder %v2823, 0.0
    %v2852 = vand.u32 %v2823, 2147483648
    %v2853 = vsel %vm2851, %v2852, %v2850
    %v2854 = vrsqrt.pop %v2824
    %v2855 = vmul.f32 %v2824, %v2854
    %vm2856 = vcmp.eq.f32.partialorder %v2824, inf
    %v2857 = vsel %vm2856, %v2824, %v2855
    %vm2858 = vcmp.eq.f32.partialorder %v2824, 0.0
    %v2859 = vand.u32 %v2824, 2147483648
    %v2860 = vsel %vm2858, %v2859, %v2857
    %v2861 = vrsqrt.pop %v2825
    %v2862 = vmul.f32 %v2825, %v2861
    %vm2863 = vcmp.eq.f32.partialorder %v2825, inf
    %v2864 = vsel %vm2863, %v2825, %v2862
    %vm2865 = vcmp.eq.f32.partialorder %v2825, 0.0
    %v2866 = vand.u32 %v2825, 2147483648
    %v2867 = vsel %vm2865, %v2866, %v2864
    %v2868 = vrsqrt.pop %v2826
    %v2869 = vmul.f32 %v2826, %v2868
    %vm2870 = vcmp.eq.f32.partialorder %v2826, inf
    %v2871 = vsel %vm2870, %v2826, %v2869
    %vm2872 = vcmp.eq.f32.partialorder %v2826, 0.0
    %v2873 = vand.u32 %v2826, 2147483648
    %v2874 = vsel %vm2872, %v2873, %v2871
    %v2875 = vrsqrt.pop %v2827
    %v2876 = vmul.f32 %v2827, %v2875
    %vm2877 = vcmp.eq.f32.partialorder %v2827, inf
    %v2878 = vsel %vm2877, %v2827, %v2876
    %vm2879 = vcmp.eq.f32.partialorder %v2827, 0.0
    %v2880 = vand.u32 %v2827, 2147483648
    %v2881 = vsel %vm2879, %v2880, %v2878
    %v2882 = vrsqrt.pop %v2828
    %v2883 = vmul.f32 %v2828, %v2882
    %vm2884 = vcmp.eq.f32.partialorder %v2828, inf
    %v2885 = vsel %vm2884, %v2828, %v2883
    %vm2886 = vcmp.eq.f32.partialorder %v2828, 0.0
    %v2887 = vand.u32 %v2828, 2147483648
    %v2888 = vsel %vm2886, %v2887, %v2885
    %v2889 = vrsqrt.pop %v2829
    %v2890 = vmul.f32 %v2829, %v2889
    %vm2891 = vcmp.eq.f32.partialorder %v2829, inf
    %v2892 = vsel %vm2891, %v2829, %v2890
    %vm2893 = vcmp.eq.f32.partialorder %v2829, 0.0
    %v2894 = vand.u32 %v2829, 2147483648
    %v2895 = vsel %vm2893, %v2894, %v2892
    %v2896 = vrsqrt.pop %v2830
    %v2897 = vmul.f32 %v2830, %v2896
    %vm2898 = vcmp.eq.f32.partialorder %v2830, inf
    %v2899 = vsel %vm2898, %v2830, %v2897
    %vm2900 = vcmp.eq.f32.partialorder %v2830, 0.0
    %v2901 = vand.u32 %v2830, 2147483648
    %v2902 = vsel %vm2900, %v2901, %v2899
    %v2903 = vrsqrt.pop %v2831
    %v2904 = vmul.f32 %v2831, %v2903
    %vm2905 = vcmp.eq.f32.partialorder %v2831, inf
    %v2906 = vsel %vm2905, %v2831, %v2904
    %vm2907 = vcmp.eq.f32.partialorder %v2831, 0.0
    %v2908 = vand.u32 %v2831, 2147483648
    %v2909 = vsel %vm2907, %v2908, %v2906
    %v2910 = vrsqrt.pop %v2832
    %v2911 = vmul.f32 %v2832, %v2910
    %vm2912 = vcmp.eq.f32.partialorder %v2832, inf
    %v2913 = vsel %vm2912, %v2832, %v2911
    %vm2914 = vcmp.eq.f32.partialorder %v2832, 0.0
    %v2915 = vand.u32 %v2832, 2147483648
    %v2916 = vsel %vm2914, %v2915, %v2913
    %v2917 = vpack.c.bf16 %v2860, %v2839
    %v2918 = vpack.c.bf16 %v2867, %v2846
    %v2919 = vpack.c.bf16 %v2874, %v2853
    %v2920 = vpack.c.bf16 %v2902, %v2881
    %v2921 = vpack.c.bf16 %v2909, %v2888
    %v2922 = vpack.c.bf16 %v2916, %v2895
    %v2923 = vld [vmem:[#allocation7] sm:$0xf]
    %v2924 = vld [vmem:[#allocation7 + $0x4] sm:$0xf]
    %v2925 = vld [vmem:[#allocation7 + $0x8] sm:$0xf]
    %v2926 = vld [vmem:[#allocation7 + $0xc] sm:$0xf]
    %v2927 = vld [vmem:[#allocation7 + $0x10] sm:$0xf]
    %v2928 = vld [vmem:[#allocation7 + $0x14] sm:$0xf]
    %v2929 = vld [vmem:[#allocation7 + $0x18] sm:$0xf]
    %v2930 = vld [vmem:[#allocation7 + $0x1c] sm:$0xf]
    %v2931 = vld [vmem:[#allocation7 + $0x20] sm:$0xf]
    %v2932 = vld [vmem:[#allocation7 + $0x24] sm:$0xf]
    %v2933 = vld [vmem:[#allocation7 + $0x28] sm:$0xf]
    %v2934 = vld [vmem:[#allocation7 + $0x2c] sm:$0xf]
    %v2935 = vld [vmem:[#allocation7 + $0x30] sm:$0xf]
    %v2936 = vld [vmem:[#allocation7 + $0x34] sm:$0xf]
    %v2937 = vld [vmem:[#allocation7 + $0x38] sm:$0xf]
    %v2938 = vld [vmem:[#allocation7 + $0x3c] sm:$0xf]
    %v2939 = vld [vmem:[#allocation7 + $0x40] sm:$0xf]
    %v2940 = vld [vmem:[#allocation7 + $0x44] sm:$0xf]
    %v2941 = vld [vmem:[#allocation7 + $0x48] sm:$0xf]
    %v2942 = vld [vmem:[#allocation7 + $0x4c] sm:$0xf]
    %v2943 = vld [vmem:[#allocation7 + $0x50] sm:$0xf]
    %v2944 = vld [vmem:[#allocation7 + $0x54] sm:$0xf]
    %v2945 = vld [vmem:[#allocation7 + $0x58] sm:$0xf]
    %v2946 = vld [vmem:[#allocation7 + $0x5c] sm:$0xf]
    %v2947 = vld [vmem:[#allocation7 + $0x60] sm:$0xf]
    %v2948 = vld [vmem:[#allocation7 + $0x64] sm:$0xf]
    %v2949 = vld [vmem:[#allocation7 + $0x68] sm:$0xf]
    %v2950 = vld [vmem:[#allocation7 + $0x6c] sm:$0xf]
    %v2951 = vld [vmem:[#allocation7 + $0x70] sm:$0xf]
    %v2952 = vld [vmem:[#allocation7 + $0x74] sm:$0xf]
    %v2953 = vld [vmem:[#allocation7 + $0x78] sm:$0xf]
    %v2954 = vld [vmem:[#allocation7 + $0x7c] sm:$0xf]
    %v2955 = vld [vmem:[#allocation7 + $0x80] sm:$0xf]
    %v2956 = vld [vmem:[#allocation7 + $0x84] sm:$0xf]
    %v2957 = vld [vmem:[#allocation7 + $0x88] sm:$0xf]
    %v2958 = vld [vmem:[#allocation7 + $0x8c] sm:$0xf]
    %v2959 = vld [vmem:[#allocation7 + $0x90] sm:$0xf]
    %v2960 = vld [vmem:[#allocation7 + $0x94] sm:$0xf]
    %v2961 = vld [vmem:[#allocation7 + $0x98] sm:$0xf]
    %v2962 = vld [vmem:[#allocation7 + $0x9c] sm:$0xf]
    %v2963 = vld [vmem:[#allocation7 + $0xa0] sm:$0xf]
    %v2964 = vld [vmem:[#allocation7 + $0xa4] sm:$0xf]
    %v2965 = vld [vmem:[#allocation7 + $0xa8] sm:$0xf]
    %v2966 = vld [vmem:[#allocation7 + $0xac] sm:$0xf]
    %v2967 = vld [vmem:[#allocation7 + $0xb0] sm:$0xf]
    %v2968 = vld [vmem:[#allocation7 + $0xb4] sm:$0xf]
    %v2969 = vld [vmem:[#allocation7 + $0xb8] sm:$0xf]
    %v2970 = vld [vmem:[#allocation7 + $0xbc] sm:$0xf]
    %v3019 = vunpack.c.l.b16 %v2923
    %v3020 = vunpack.c.l.b16 %v2924
    %v3021 = vunpack.c.l.b16 %v2925
    %v3022 = vunpack.c.l.b16 %v2926
    %v3023 = vunpack.c.l.b16 %v2927
    %v3024 = vunpack.c.l.b16 %v2928
    %v3025 = vunpack.c.l.b16 %v2929
    %v3026 = vunpack.c.l.b16 %v2930
    %v3027 = vunpack.c.l.b16 %v2931
    %v3028 = vunpack.c.l.b16 %v2932
    %v3029 = vunpack.c.l.b16 %v2933
    %v3030 = vunpack.c.l.b16 %v2934
    %v3031 = vunpack.c.l.b16 %v2935
    %v3032 = vunpack.c.l.b16 %v2936
    %v3033 = vunpack.c.l.b16 %v2937
    %v3034 = vunpack.c.l.b16 %v2938
    %v3035 = vunpack.c.l.b16 %v2939
    %v3036 = vunpack.c.l.b16 %v2940
    %v3037 = vunpack.c.l.b16 %v2941
    %v3038 = vunpack.c.l.b16 %v2942
    %v3039 = vunpack.c.l.b16 %v2943
    %v3040 = vunpack.c.l.b16 %v2944
    %v3041 = vunpack.c.l.b16 %v2945
    %v3042 = vunpack.c.l.b16 %v2946
    %v3043 = vunpack.c.l.b16 %v2947
    %v3044 = vunpack.c.l.b16 %v2948
    %v3045 = vunpack.c.l.b16 %v2949
    %v3046 = vunpack.c.l.b16 %v2950
    %v3047 = vunpack.c.l.b16 %v2951
    %v3048 = vunpack.c.l.b16 %v2952
    %v3049 = vunpack.c.l.b16 %v2953
    %v3050 = vunpack.c.l.b16 %v2954
    %v3051 = vunpack.c.l.b16 %v2955
    %v3052 = vunpack.c.l.b16 %v2956
    %v3053 = vunpack.c.l.b16 %v2957
    %v3054 = vunpack.c.l.b16 %v2958
    %v3055 = vunpack.c.l.b16 %v2959
    %v3056 = vunpack.c.l.b16 %v2960
    %v3057 = vunpack.c.l.b16 %v2961
    %v3058 = vunpack.c.l.b16 %v2962
    %v3059 = vunpack.c.l.b16 %v2963
    %v3060 = vunpack.c.l.b16 %v2964
    %v3061 = vunpack.c.l.b16 %v2965
    %v3062 = vunpack.c.l.b16 %v2966
    %v3063 = vunpack.c.l.b16 %v2967
    %v3064 = vunpack.c.l.b16 %v2968
    %v3065 = vunpack.c.l.b16 %v2969
    %v3066 = vunpack.c.l.b16 %v2970
    %v3067 = vpack.c.b16 %v3020, %v3019
    %v3068 = vpack.c.b16 %v3022, %v3021
    %v3069 = vpack.c.b16 %v3024, %v3023
    %v3070 = vpack.c.b16 %v3026, %v3025
    %v3071 = vpack.c.b16 %v3028, %v3027
    %v3072 = vpack.c.b16 %v3030, %v3029
    %v3073 = vpack.c.b16 %v3032, %v3031
    %v3074 = vpack.c.b16 %v3034, %v3033
    %v3075 = vpack.c.b16 %v3036, %v3035
    %v3076 = vpack.c.b16 %v3038, %v3037
    %v3077 = vpack.c.b16 %v3040, %v3039
    %v3078 = vpack.c.b16 %v3042, %v3041
    %v3079 = vpack.c.b16 %v3044, %v3043
    %v3080 = vpack.c.b16 %v3046, %v3045
    %v3081 = vpack.c.b16 %v3048, %v3047
    %v3082 = vpack.c.b16 %v3050, %v3049
    %v3083 = vpack.c.b16 %v3052, %v3051
    %v3084 = vpack.c.b16 %v3054, %v3053
    %v3085 = vpack.c.b16 %v3056, %v3055
    %v3086 = vpack.c.b16 %v3058, %v3057
    %v3087 = vpack.c.b16 %v3060, %v3059
    %v3088 = vpack.c.b16 %v3062, %v3061
    %v3089 = vpack.c.b16 %v3064, %v3063
    %v3090 = vpack.c.b16 %v3066, %v3065
    %3115 = vmatprep.subr.bf16.mxu0 0
    %3116 = vmatpush1.bf16.msra.mxu0 %v3067
    %3117 = vmatprep.subr.bf16.mxu0 0
    %3118 = vmatpush1.bf16.msra.mxu0 %v3068
    %3119 = vmatprep.subr.bf16.mxu0 0
    %3120 = vmatpush1.bf16.msra.mxu0 %v3069
    %3121 = vmatprep.subr.bf16.mxu0 0
    %3122 = vmatpush1.bf16.msra.mxu0 %v3070
    %3123 = vmatprep.subr.bf16.mxu0 0
    %3124 = vmatpush1.bf16.msra.mxu0 %v3071
    %3125 = vmatprep.subr.bf16.mxu0 0
    %3126 = vmatpush1.bf16.msra.mxu0 %v3072
    %3127 = vmatprep.subr.bf16.mxu0 0
    %3128 = vmatpush1.bf16.msra.mxu0 %v3073
    %3129 = vmatprep.subr.bf16.mxu0 0
    %3130 = vmatpush1.bf16.msra.mxu0 %v3074
    %3131 = vmatprep.subr.bf16.mxu0 0
    %3132 = vmatpush1.bf16.msra.mxu0 %v3075
    %3133 = vmatprep.subr.bf16.mxu0 0
    %3134 = vmatpush1.bf16.msra.mxu0 %v3076
    %3135 = vmatprep.subr.bf16.mxu0 0
    %3136 = vmatpush1.bf16.msra.mxu0 %v3077
    %3137 = vmatprep.subr.bf16.mxu0 0
    %3138 = vmatpush1.bf16.msra.mxu0 %v3078
    %3139 = vmatprep.subr.bf16.mxu0 0
    %3140 = vmatpush1.bf16.msra.mxu0 %v3079
    %3141 = vmatprep.subr.bf16.mxu0 0
    %3142 = vmatpush1.bf16.msra.mxu0 %v3080
    %3143 = vmatprep.subr.bf16.mxu0 0
    %3144 = vmatpush1.bf16.msra.mxu0 %v3081
    %3145 = vmatprep.subr.bf16.mxu0 0
    %3146 = vmatpush1.bf16.msra.mxu0 %v3082
    %3147 = vmatprep.mubr.bf16.mxu0 %v2918
    %3148 = vmatmul.mubr.bf16.gmra.mrb[0].mxu0 %v2917
    %v3149 = vpop.f32.mrb[0].mxu0
    %v3150 = vadd.f32 0.0, %v3149
    %v3151 = vpop.f32.mrb[0].mxu0
    %v3152 = vpop.f32.mrb[0].mxu0
    %v3153 = vadd.f32 0.0, %v3152
    %v3154 = vpop.f32.mrb[0].mxu0
    %3155 = vmatprep.mubr.bf16.mxu0 %v2921
    %3156 = vmatmul.mubr.bf16.gmra.mrb[0].mxu0 %v2920
    %v3157 = vpop.f32.mrb[0].mxu0
    %v3158 = vadd.f32 0.0, %v3157
    %v3159 = vpop.f32.mrb[0].mxu0
    %v3160 = vpop.f32.mrb[0].mxu0
    %v3161 = vadd.f32 0.0, %v3160
    %v3162 = vpop.f32.mrb[0].mxu0
    %3163 = vdwg.mxu0
    %3164 = vmatprep.subr.bf16.mxu0 0
    %3165 = vmatpush1.bf16.msra.mxu0 %v3083
    %3166 = vmatprep.subr.bf16.mxu0 0
    %3167 = vmatpush1.bf16.msra.mxu0 %v3084
    %3168 = vmatprep.subr.bf16.mxu0 0
    %3169 = vmatpush1.bf16.msra.mxu0 %v3085
    %3170 = vmatprep.subr.bf16.mxu0 0
    %3171 = vmatpush1.bf16.msra.mxu0 %v3086
    %3172 = vmatprep.subr.bf16.mxu0 0
    %3173 = vmatpush1.bf16.msra.mxu0 %v3087
    %3174 = vmatprep.subr.bf16.mxu0 0
    %3175 = vmatpush1.bf16.msra.mxu0 %v3088
    %3176 = vmatprep.subr.bf16.mxu0 0
    %3177 = vmatpush1.bf16.msra.mxu0 %v3089
    %3178 = vmatprep.subr.bf16.mxu0 0
    %3179 = vmatpush1.bf16.msra.mxu0 %v3090
    %3180 = vmatprep.subr.bf16.mxu0 0
    %3181 = vmatpush1.bf16.msra.mxu0 0
    %3182 = vmatprep.subr.bf16.mxu0 0
    %3183 = vmatpush1.bf16.msra.mxu0 0
    %3184 = vmatprep.subr.bf16.mxu0 0
    %3185 = vmatpush1.bf16.msra.mxu0 0
    %3186 = vmatprep.subr.bf16.mxu0 0
    %3187 = vmatpush1.bf16.msra.mxu0 0
    %3188 = vmatprep.subr.bf16.mxu0 0
    %3189 = vmatpush1.bf16.msra.mxu0 0
    %3190 = vmatprep.subr.bf16.mxu0 0
    %3191 = vmatpush1.bf16.msra.mxu0 0
    %3192 = vmatprep.subr.bf16.mxu0 0
    %3193 = vmatpush1.bf16.msra.mxu0 0
    %3194 = vmatprep.subr.bf16.mxu0 0
    %3195 = vmatpush1.bf16.msra.mxu0 0
    %3196 = vmatprep.mubr.bf16.mxu0 0
    %3197 = vmatmul.mubr.bf16.gmra.mrb[0].mxu0 %v2919
    %v3198 = vpop.f32.mrb[0].mxu0
    %v3199 = vadd.f32 %v3150, %v3198
    %v3200 = vpop.f32.mrb[0].mxu0
    %v3201 = vpop.f32.mrb[0].mxu0
    %v3202 = vadd.f32 %v3153, %v3201
    %v3203 = vpop.f32.mrb[0].mxu0
    %3204 = vmatprep.mubr.bf16.mxu0 0
    %3205 = vmatmul.mubr.bf16.gmra.mrb[0].mxu0 %v2922
    %v3206 = vpop.f32.mrb[0].mxu0
    %v3207 = vadd.f32 %v3158, %v3206
    %v3208 = vpop.f32.mrb[0].mxu0
    %v3209 = vpop.f32.mrb[0].mxu0
    %v3210 = vadd.f32 %v3161, %v3209
    %v3211 = vpop.f32.mrb[0].mxu0
    %3212 = vdwg.mxu0
    %v3213 = vmax.f32 %v3199, 9.9999e-06
    %v3214 = vmax.f32 %v3202, 9.9999e-06
    %v3215 = vmax.f32 %v3207, 9.9999e-06
    %v3216 = vmax.f32 %v3210, 9.9999e-06
    %v3217 = vlog2.pop %v3213
    %v3218 = vmul.f32 %v3217, 0.6931472
    %v3219 = vlog2.pop %v3214
    %v3220 = vmul.f32 %v3219, 0.6931472
    %v3221 = vlog2.pop %v3215
    %v3222 = vmul.f32 %v3221, 0.6931472
    %v3223 = vlog2.pop %v3216
    %v3224 = vmul.f32 %v3223, 0.6931472
    %v3225 = vmul.f32 %v3218, 0.6948712
    %v3226 = vmul.f32 %v3220, 0.6948712
    %v3227 = vmul.f32 %v3222, 0.6948712
    %v3228 = vmul.f32 %v3224, 0.6948712
    %v3229 = vadd.f32 %v3225, 2.4
    %v3230 = vadd.f32 %v3226, 2.4
    %v3231 = vadd.f32 %v3227, 2.4
    %v3232 = vadd.f32 %v3228, 2.4
    %v3233 = vmax.f32 %v3229, -4.0
    %v3234 = vmax.f32 %v3230, -4.0
    %v3235 = vmax.f32 %v3231, -4.0
    %v3236 = vmax.f32 %v3232, -4.0
    %v3237 = vmin.f32 %v3233, 4.0
    %v3238 = vmin.f32 %v3234, 4.0
    %v3239 = vmin.f32 %v3235, 4.0
    %v3240 = vmin.f32 %v3236, 4.0
    %3241 = vst [vmem:[#allocation8] sm:$0xff] %v3237
    %3242 = vst [vmem:[#allocation8 + $0x8] sm:$0xff] %v3238
    %3243 = vst [vmem:[#allocation8 + $0x10] sm:$0xff] %v3239
    %3244 = vst [vmem:[#allocation8 + $0x18] sm:$0xff] %v3240
    // Predicated region
    $region26: #{tpu_custom_call.1} parent=1 // pred_check
      _
    $region27: #{tpu_custom_call.1} parent=1 // pred_check_branch
      %3246 = sbr.rel (0) target = $region29
    $region28: #{tpu_custom_call.1} parent=1 // pred_region
      %s3248 = ssub.s32 512, 512
      %3249 = vsyncadd [#allocation4], %s3248
      %s3250 = sshll.u32 [#allocation8], 4
      %s3251 = int_to_ptr.vmem [resolvable:$true] %s3250
      %3256 = dma.vmem_to_hbm [thread:$0]  %s3251, 512, %s3, [#allocation4], 128, 128, 8
    $region29: #{tpu_custom_call.1} parent=1 // pred_fallthru
      _
    // Predicated region
    $region30: #{tpu_custom_call.1} parent=1 // pred_check
      _
    $region31: #{tpu_custom_call.1} parent=1 // pred_check_branch
      %3258 = sbr.rel (0) target = $region33
    $region32: #{tpu_custom_call.1} parent=1 // pred_region
      %3259 = dma.done [#allocation4], 512
    $region33: #{tpu_custom_call.1} parent=1 // pred_fallthru
      _
    %3260 = vsyncpa [#allocation3], 1
    %3261 = vsyncpa [#allocation6], 1
    %3262 = vsyncpa [#allocation4], 1

</llo_original>
